<compile_context>
chip_gen: v7x
topology: tpu7x:2x2x1
jax: 0.10.0
libtpu: 0.0.40
codegen_flags: <defaults>
</compile_context>

<pallas_src>
import jax
import jax.numpy as jnp
from jax.experimental import pallas as pl
from jax.experimental.pallas import tpu as pltpu

# ---- model config (small, TPU-friendly) -------------------------------------
D_MODEL = 64
N_HEADS = 8
HEAD_DIM = D_MODEL // N_HEADS          # 8
DIM_FF = 128
SEQ = 16
BATCH = 2
SCALE = HEAD_DIM ** (-0.5)
LN_EPS = 1e-5
HS = N_HEADS * SEQ                     # 128 == lane-dense packed-heads axis

# Row offsets inside the packed parameter slabs (all multiples of 8 -> clean
# static sublane slices; each slab is one DMA).
# mat64 (512, 64): [Wq | Wk | Wv | Wo | W2 | head_mask]
_WQ, _WK, _WV, _WO = 0, 64, 128, 192
_W2 = 256
_HM = _W2 + DIM_FF                     # 384
MAT64_ROWS = _HM + HS                  # 512
# mat128 (272, 128): [W1 | group_ones | head_mask_T | grep_T]
_W1 = 0
_GO = D_MODEL                          # 64
_HMT = _GO + HS                        # 192
_GT = _HMT + D_MODEL                   # 256
MAT128_ROWS = _GT + SEQ                # 272
# vecs (8, 128): one bias vector per row (lane offset 0)
_BQ, _BK, _BV, _BO, _BF2, _BF1 = 0, 1, 2, 3, 4, 5


# ---- kernel ------------------------------------------------------------------
def encoder_layer_kernel(x_ref, mat64_ref, mat128_ref, vecs_ref, o_ref):
    x = x_ref[...]                                        # (B*S, D) = (32, 64)

    # Static views into the packed parameter slabs (zero-cost slices).
    wq = mat64_ref[_WQ:_WQ + D_MODEL, :]
    wk = mat64_ref[_WK:_WK + D_MODEL, :]
    wv = mat64_ref[_WV:_WV + D_MODEL, :]
    wo = mat64_ref[_WO:_WO + D_MODEL, :]
    w2 = mat64_ref[_W2:_W2 + DIM_FF, :]
    head_mask = mat64_ref[_HM:_HM + HS, :]                # (128, 64)

    w1 = mat128_ref[_W1:_W1 + D_MODEL, :]                 # (64, 128)
    group_ones = mat128_ref[_GO:_GO + HS, :]              # (128, 128)
    head_mask_t = mat128_ref[_HMT:_HMT + D_MODEL, :]      # (64, 128)
    grep_t = mat128_ref[_GT:_GT + SEQ, :]                 # (16, 128)

    bq = vecs_ref[_BQ:_BQ + 1, 0:D_MODEL]
    bk = vecs_ref[_BK:_BK + 1, 0:D_MODEL]
    bv = vecs_ref[_BV:_BV + 1, 0:D_MODEL]
    bo = vecs_ref[_BO:_BO + 1, 0:D_MODEL]
    bf2 = vecs_ref[_BF2:_BF2 + 1, 0:D_MODEL]
    bf1 = vecs_ref[_BF1:_BF1 + 1, :]                      # (1, 128)

    def norm(h):
        # LayerNorm affine (gamma/beta) is folded into the consuming
        # projection's weights/biases in prepare_params(); only the
        # normalization itself runs in-kernel.
        mu = jnp.mean(h, axis=-1, keepdims=True)
        var = jnp.mean((h - mu) ** 2, axis=-1, keepdims=True)
        return (h - mu) * jax.lax.rsqrt(var + LN_EPS)

    # ---- sublayer 1: pre-norm self-attention + residual ----
    h = norm(x)
    # Three separate projections (no lane-offset extraction of a fused slab).
    # Attention scale and LN1 affine are pre-folded into wq/bq (wk/wv too).
    q_all = jnp.dot(h, wq, preferred_element_type=jnp.float32) + bq   # (32,64)
    k_all = jnp.dot(h, wk, preferred_element_type=jnp.float32) + bk
    v_all = jnp.dot(h, wv, preferred_element_type=jnp.float32) + bv

    attn_rows = []
    for b in range(BATCH):                                # static, tiny loop
        r0 = b * SEQ
        q = q_all[r0:r0 + SEQ, :]                         # (16,64), pre-scaled
        k = k_all[r0:r0 + SEQ, :]
        v = v_all[r0:r0 + SEQ, :]

        # Block-diagonal head packing along the 128-lane axis, built with
        # lhs-dim-0 contractions so no RHS (XLU) transpose is needed:
        #   kblk_T[c, h*S + t] = K[t, c]   iff c // hd == h
        #   vblk [h*S + t, c]  = V[t, c]   iff c // hd == h
        kblk_t = jax.lax.dot_general(
            k, grep_t, (((0,), (0,)), ((), ())),
            preferred_element_type=jnp.float32) * head_mask_t          # (64,128)
        vblk = jax.lax.dot_general(
            grep_t, v, (((0,), (0,)), ((), ())),
            preferred_element_type=jnp.float32) * head_mask            # (128,64)

        # All heads' scores in one standard matmul: s[i, h*S+t] = q_h[i].k_h[t]
        s = jnp.dot(q, kblk_t, preferred_element_type=jnp.float32)     # (16,128)

        # Row-wide max is a per-row constant shift, identical across the head
        # groups, so the per-head softmax is unchanged (exp args <= 0).
        s = s - jnp.max(s, axis=-1, keepdims=True)
        p = jnp.exp(s)
        # Per-head sums broadcast back across each 16-lane group in one matmul.
        denom = jnp.dot(p, group_ones, preferred_element_type=jnp.float32)
        p = p / denom            # exact divide (correctness fix vs approx rcp)
        # dropout on attention weights: identity (eval)

        # PV directly yields the head-concatenated (S, D) layout.
        attn_rows.append(jnp.dot(p, vblk, preferred_element_type=jnp.float32))

    attn = jnp.concatenate(attn_rows, axis=0)             # (B*S, D)
    attn = jnp.dot(attn, wo, preferred_element_type=jnp.float32) + bo

    x1 = x + attn                                         # dropout1 = identity

    # ---- sublayer 2: pre-norm feed-forward + residual ----
    h2 = norm(x1)                                         # LN2 affine folded into w1/bf1
    f = jnp.dot(h2, w1, preferred_element_type=jnp.float32) + bf1
    f = jnp.maximum(f, 0.0)                               # ReLU; inner dropout = identity
    f = jnp.dot(f, w2, preferred_element_type=jnp.float32) + bf2
    y = x1 + f                                            # dropout2 = identity

    # Lane-dense store: pack the batch along lanes -> (S, B*D) = (16, 128).
    o_ref[...] = jnp.concatenate(
        [y[b * SEQ:(b + 1) * SEQ, :] for b in range(BATCH)], axis=-1)


# ---- wrapper -----------------------------------------------------------------
def transformer_encoder_layer(x, kparams):
    """kparams must be the output of prepare_params() (packed slabs)."""
    B, S, D = x.shape
    assert B == BATCH and S == SEQ and D == D_MODEL

    x_flat = x.reshape(B * S, D)          # free metadata reshape (row-major)
    inputs = [x_flat, kparams["mat64"], kparams["mat128"], kparams["vecs"]]

    def full_spec(arr):
        return pl.BlockSpec(arr.shape, lambda i: (0, 0))

    out_packed = pl.pallas_call(
        encoder_layer_kernel,
        out_shape=jax.ShapeDtypeStruct((S, B * D), jnp.float32),
        grid_spec=pltpu.PrefetchScalarGridSpec(
            num_scalar_prefetch=0,
            grid=(1,),                                    # batch folded: one step
            in_specs=[full_spec(a) for a in inputs],
            out_specs=pl.BlockSpec((S, B * D), lambda i: (0, 0)),
        ),
        compiler_params=pltpu.CompilerParams(
            dimension_semantics=("arbitrary",)),
    )(*inputs)

    # Un-pack the lane-dense slab back to (B, S, D) outside the kernel.
    return out_packed.reshape(S, B, D).transpose(1, 0, 2)


# ---- deterministic parameter init ---------------------------------------------
def init_params(key):
    ks = jax.random.split(key, 12)

    def lin(k, fan_in, fan_out):
        # weights stored transposed relative to torch: (in, out), so x @ W + b
        return jax.random.normal(k, (fan_in, fan_out), jnp.float32) * (fan_in ** -0.5)

    return {
        "wqkv": lin(ks[0], D_MODEL, 3 * D_MODEL),
        "bqkv": jax.random.normal(ks[1], (1, 3 * D_MODEL), jnp.float32) * 0.02,
        "wo":   lin(ks[2], D_MODEL, D_MODEL),
        "bo":   jax.random.normal(ks[3], (1, D_MODEL), jnp.float32) * 0.02,
        "g1":   1.0 + 0.1 * jax.random.normal(ks[4], (1, D_MODEL), jnp.float32),
        "be1":  0.1 * jax.random.normal(ks[5], (1, D_MODEL), jnp.float32),
        "g2":   1.0 + 0.1 * jax.random.normal(ks[6], (1, D_MODEL), jnp.float32),
        "be2":  0.1 * jax.random.normal(ks[7], (1, D_MODEL), jnp.float32),
        "w1":   lin(ks[8], D_MODEL, DIM_FF),
        "bf1":  jax.random.normal(ks[9], (1, DIM_FF), jnp.float32) * 0.02,
        "w2":   lin(ks[10], DIM_FF, D_MODEL),
        "bf2":  jax.random.normal(ks[11], (1, D_MODEL), jnp.float32) * 0.02,
    }


# ---- one-time parameter preparation (folds + constant packing) ----------------
def prepare_params(p):
    """Fold LN affines + attention scale into the projections, precompute the
    constant head-packing matrices, and pack everything into four kernel
    inputs (one DMA each)."""
    hi = jax.lax.Precision.HIGHEST

    wq = p["wqkv"][:, 0:D_MODEL]
    wk = p["wqkv"][:, D_MODEL:2 * D_MODEL]
    wv = p["wqkv"][:, 2 * D_MODEL:3 * D_MODEL]
    bq = p["bqkv"][:, 0:D_MODEL]
    bk = p["bqkv"][:, D_MODEL:2 * D_MODEL]
    bv = p["bqkv"][:, 2 * D_MODEL:3 * D_MODEL]
    g1, be1, g2, be2 = p["g1"], p["be1"], p["g2"], p["be2"]

    # LN1(x) = norm(x)*g1 + be1 feeds only the QKV projections, so fold the
    # affine into them; fold the attention scale into the Q branch.
    wq_f = (wq * g1.T) * SCALE
    bq_f = (bq + jnp.dot(be1, wq, precision=hi)) * SCALE
    wk_f = wk * g1.T
    bk_f = bk + jnp.dot(be1, wk, precision=hi)
    wv_f = wv * g1.T
    bv_f = bv + jnp.dot(be1, wv, precision=hi)

    # LN2(x1) feeds only the first FFN projection.
    w1_f = p["w1"] * g2.T
    bf1_f = p["bf1"] + jnp.dot(be2, p["w1"], precision=hi)

    # Constant head-packing matrices (precomputed, per perf review).
    lane = jnp.arange(HS)
    grep_t = (jnp.arange(SEQ)[:, None] == (lane[None, :] % SEQ)
              ).astype(jnp.float32)                                     # (16,128)
    head_mask_t = ((jnp.arange(D_MODEL)[:, None] // HEAD_DIM)
                   == (lane[None, :] // SEQ)).astype(jnp.float32)       # (64,128)
    head_mask = head_mask_t.T                                           # (128,64)
    group_ones = ((lane[:, None] // SEQ) == (lane[None, :] // SEQ)
                  ).astype(jnp.float32)                                 # (128,128)

    mat64 = jnp.concatenate([wq_f, wk_f, wv_f, p["wo"], p["w2"], head_mask],
                            axis=0)
    mat128 = jnp.concatenate([w1_f, group_ones, head_mask_t, grep_t], axis=0)

    vecs = jnp.zeros((8, HS), jnp.float32)
    vecs = vecs.at[_BQ, 0:D_MODEL].set(bq_f[0])
    vecs = vecs.at[_BK, 0:D_MODEL].set(bk_f[0])
    vecs = vecs.at[_BV, 0:D_MODEL].set(bv_f[0])
    vecs = vecs.at[_BO, 0:D_MODEL].set(p["bo"][0])
    vecs = vecs.at[_BF2, 0:D_MODEL].set(p["bf2"][0])
    vecs = vecs.at[_BF1, :].set(bf1_f[0])

    assert mat64.shape == (MAT64_ROWS, D_MODEL)
    assert mat128.shape == (MAT128_ROWS, HS)
    return {"mat64": mat64, "mat128": mat128, "vecs": vecs}


# ---- pure-JAX reference (torch-equivalent, highest matmul precision) -----------
def reference(x, p):
    hi = jax.lax.Precision.HIGHEST

    def ln(h, g, b):
        mu = jnp.mean(h, axis=-1, keepdims=True)
        var = jnp.mean((h - mu) ** 2, axis=-1, keepdims=True)
        return (h - mu) / jnp.sqrt(var + LN_EPS) * g + b

    B, S, D = x.shape
    h = ln(x, p["g1"], p["be1"])
    qkv = jnp.matmul(h, p["wqkv"], precision=hi) + p["bqkv"]
    qkv = qkv.reshape(B, S, 3, N_HEADS, HEAD_DIM).transpose(2, 0, 3, 1, 4)
    q, k, v = qkv[0], qkv[1], qkv[2]                   # (B, H, S, hd)
    s = jnp.einsum("bhqd,bhkd->bhqk", q, k, precision=hi) * SCALE
    w = jax.nn.softmax(s, axis=-1)
    o = jnp.einsum("bhqk,bhkd->bhqd", w, v, precision=hi)
    o = o.transpose(0, 2, 1, 3).reshape(B, S, D)
    o = jnp.matmul(o, p["wo"], precision=hi) + p["bo"]
    x1 = x + o
    h2 = ln(x1, p["g2"], p["be2"])
    f = jnp.maximum(jnp.matmul(h2, p["w1"], precision=hi) + p["bf1"], 0.0)
    f = jnp.matmul(f, p["w2"], precision=hi) + p["bf2"]
    return x1 + f


if __name__ == "__main__":
    key = jax.random.PRNGKey(0)
    kx, kp = jax.random.split(key)
    x = jax.random.normal(kx, (BATCH, SEQ, D_MODEL), jnp.float32)
    params = init_params(kp)
    kernel_params = prepare_params(params)     # folds + packing done once, outside kernel

    out = transformer_encoder_layer(x, kernel_params)
    out = jax.block_until_ready(out)

    ref = reference(x, params)
    assert out.shape == (BATCH, SEQ, D_MODEL)
    max_err = float(jnp.max(jnp.abs(out - ref)))
    assert jnp.allclose(out, ref, atol=2e-3, rtol=2e-3), f"max err {max_err}"

    # TODO(synk): training-mode dropout (stochastic masking) not implemented;
    # eval semantics (identity) assumed throughout.
    print("KERNEL_OK")
</pallas_src>

<mosaic_0001>
module attributes {stable_mosaic.version = 11 : i64} {
  func.func @encoder_layer_kernel(%arg0: i32, %arg1: memref<32x64xf32, #tpu.memory_space<vmem>>, %arg2: memref<512x64xf32, #tpu.memory_space<vmem>>, %arg3: memref<272x128xf32, #tpu.memory_space<vmem>>, %arg4: memref<8x128xf32, #tpu.memory_space<vmem>>, %arg5: memref<16x128xf32, #tpu.memory_space<vmem>>) attributes {dimension_semantics = [#tpu.dimension_semantics<arbitrary>], iteration_bounds = array<i64: 1>, scalar_prefetch = 0 : i64, scratch_operands = 0 : i64, tpu.core_type = #tpu.core_type<tc>, window_params = [{pipeline_mode = #tpu.pipeline_mode<synchronous>, transform_indices = @transform_0, window_bounds = array<i64: 32, 64>}, {pipeline_mode = #tpu.pipeline_mode<synchronous>, transform_indices = @transform_1, window_bounds = array<i64: 512, 64>}, {pipeline_mode = #tpu.pipeline_mode<synchronous>, transform_indices = @transform_2, window_bounds = array<i64: 272, 128>}, {pipeline_mode = #tpu.pipeline_mode<synchronous>, transform_indices = @transform_3, window_bounds = array<i64: 8, 128>}, {pipeline_mode = #tpu.pipeline_mode<synchronous>, transform_indices = @transform_4, window_bounds = array<i64: 16, 128>}]} {
    %c0 = arith.constant 0 : index
    %c0_0 = arith.constant 0 : index
    %0 = vector.load %arg1[%c0, %c0_0] : memref<32x64xf32, #tpu.memory_space<vmem>>, vector<32x64xf32>
    %c0_1 = arith.constant 0 : index
    %c0_2 = arith.constant 0 : index
    %1 = vector.load %arg2[%c0_1, %c0_2] : memref<512x64xf32, #tpu.memory_space<vmem>>, vector<64x64xf32>
    %c64 = arith.constant 64 : index
    %c0_3 = arith.constant 0 : index
    %2 = vector.load %arg2[%c64, %c0_3] : memref<512x64xf32, #tpu.memory_space<vmem>>, vector<64x64xf32>
    %c128 = arith.constant 128 : index
    %c0_4 = arith.constant 0 : index
    %3 = vector.load %arg2[%c128, %c0_4] : memref<512x64xf32, #tpu.memory_space<vmem>>, vector<64x64xf32>
    %c192 = arith.constant 192 : index
    %c0_5 = arith.constant 0 : index
    %4 = vector.load %arg2[%c192, %c0_5] : memref<512x64xf32, #tpu.memory_space<vmem>>, vector<64x64xf32>
    %c256 = arith.constant 256 : index
    %c0_6 = arith.constant 0 : index
    %5 = vector.load %arg2[%c256, %c0_6] : memref<512x64xf32, #tpu.memory_space<vmem>>, vector<128x64xf32>
    %c384 = arith.constant 384 : index
    %c0_7 = arith.constant 0 : index
    %6 = vector.load %arg2[%c384, %c0_7] : memref<512x64xf32, #tpu.memory_space<vmem>>, vector<128x64xf32>
    %c0_8 = arith.constant 0 : index
    %c0_9 = arith.constant 0 : index
    %7 = vector.load %arg3[%c0_8, %c0_9] : memref<272x128xf32, #tpu.memory_space<vmem>>, vector<64x128xf32>
    %c64_10 = arith.constant 64 : index
    %c0_11 = arith.constant 0 : index
    %8 = vector.load %arg3[%c64_10, %c0_11] : memref<272x128xf32, #tpu.memory_space<vmem>>, vector<128x128xf32>
    %c192_12 = arith.constant 192 : index
    %c0_13 = arith.constant 0 : index
    %9 = vector.load %arg3[%c192_12, %c0_13] : memref<272x128xf32, #tpu.memory_space<vmem>>, vector<64x128xf32>
    %c256_14 = arith.constant 256 : index
    %c0_15 = arith.constant 0 : index
    %10 = vector.load %arg3[%c256_14, %c0_15] : memref<272x128xf32, #tpu.memory_space<vmem>>, vector<16x128xf32>
    %c0_16 = arith.constant 0 : index
    %c0_17 = arith.constant 0 : index
    %11 = vector.load %arg4[%c0_16, %c0_17] : memref<8x128xf32, #tpu.memory_space<vmem>>, vector<1x64xf32>
    %c1 = arith.constant 1 : index
    %c0_18 = arith.constant 0 : index
    %12 = vector.load %arg4[%c1, %c0_18] : memref<8x128xf32, #tpu.memory_space<vmem>>, vector<1x64xf32>
    %c2 = arith.constant 2 : index
    %c0_19 = arith.constant 0 : index
    %13 = vector.load %arg4[%c2, %c0_19] : memref<8x128xf32, #tpu.memory_space<vmem>>, vector<1x64xf32>
    %c3 = arith.constant 3 : index
    %c0_20 = arith.constant 0 : index
    %14 = vector.load %arg4[%c3, %c0_20] : memref<8x128xf32, #tpu.memory_space<vmem>>, vector<1x64xf32>
    %c4 = arith.constant 4 : index
    %c0_21 = arith.constant 0 : index
    %15 = vector.load %arg4[%c4, %c0_21] : memref<8x128xf32, #tpu.memory_space<vmem>>, vector<1x64xf32>
    %c5 = arith.constant 5 : index
    %c0_22 = arith.constant 0 : index
    %16 = vector.load %arg4[%c5, %c0_22] : memref<8x128xf32, #tpu.memory_space<vmem>>, vector<1x128xf32>
    %cst = arith.constant dense<0.000000e+00> : vector<32xf32>
    %17 = vector.multi_reduction <add>, %0, %cst [1] : vector<32x64xf32> to vector<32xf32>
    %18 = vector.shape_cast %17 : vector<32xf32> to vector<32x1xf32>
    %cst_23 = arith.constant 6.400000e+01 : f32
    %19 = vector.broadcast %cst_23 : f32 to vector<32x1xf32>
    %20 = arith.divf %18, %19 : vector<32x1xf32>
    %21 = vector.broadcast %20 : vector<32x1xf32> to vector<32x64xf32>
    %22 = arith.subf %0, %21 : vector<32x64xf32>
    %23 = arith.mulf %22, %22 : vector<32x64xf32>
    %cst_24 = arith.constant dense<0.000000e+00> : vector<32xf32>
    %24 = vector.multi_reduction <add>, %23, %cst_24 [1] : vector<32x64xf32> to vector<32xf32>
    %25 = vector.shape_cast %24 : vector<32xf32> to vector<32x1xf32>
    %cst_25 = arith.constant 6.400000e+01 : f32
    %26 = vector.broadcast %cst_25 : f32 to vector<32x1xf32>
    %27 = arith.divf %25, %26 : vector<32x1xf32>
    %28 = vector.broadcast %20 : vector<32x1xf32> to vector<32x64xf32>
    %29 = arith.subf %0, %28 : vector<32x64xf32>
    %cst_26 = arith.constant 9.99999974E-6 : f32
    %30 = vector.broadcast %cst_26 : f32 to vector<32x1xf32>
    %31 = arith.addf %27, %30 : vector<32x1xf32>
    %32 = math.rsqrt %31 : vector<32x1xf32>
    %33 = vector.broadcast %32 : vector<32x1xf32> to vector<32x64xf32>
    %34 = arith.mulf %29, %33 : vector<32x64xf32>
    %cst_27 = arith.constant dense<0.000000e+00> : vector<32x64xf32>
    %35 = tpu.matmul %34, %1, %cst_27 {dimension_numbers = #tpu.dot_dimension_numbers<[1], [0], [0], [1], [0, 0, 1, 1], [], []>} : vector<32x64xf32>, vector<64x64xf32>, vector<32x64xf32> -> vector<32x64xf32>
    %36 = vector.broadcast %11 : vector<1x64xf32> to vector<32x64xf32>
    %37 = arith.addf %35, %36 : vector<32x64xf32>
    %cst_28 = arith.constant dense<0.000000e+00> : vector<32x64xf32>
    %38 = tpu.matmul %34, %2, %cst_28 {dimension_numbers = #tpu.dot_dimension_numbers<[1], [0], [0], [1], [0, 0, 1, 1], [], []>} : vector<32x64xf32>, vector<64x64xf32>, vector<32x64xf32> -> vector<32x64xf32>
    %39 = vector.broadcast %12 : vector<1x64xf32> to vector<32x64xf32>
    %40 = arith.addf %38, %39 : vector<32x64xf32>
    %cst_29 = arith.constant dense<0.000000e+00> : vector<32x64xf32>
    %41 = tpu.matmul %34, %3, %cst_29 {dimension_numbers = #tpu.dot_dimension_numbers<[1], [0], [0], [1], [0, 0, 1, 1], [], []>} : vector<32x64xf32>, vector<64x64xf32>, vector<32x64xf32> -> vector<32x64xf32>
    %42 = vector.broadcast %13 : vector<1x64xf32> to vector<32x64xf32>
    %43 = arith.addf %41, %42 : vector<32x64xf32>
    %44 = vector.extract_strided_slice %37 {offsets = [0, 0], sizes = [16, 64], strides = [1, 1]} : vector<32x64xf32> to vector<16x64xf32>
    %45 = vector.extract_strided_slice %40 {offsets = [0, 0], sizes = [16, 64], strides = [1, 1]} : vector<32x64xf32> to vector<16x64xf32>
    %46 = vector.extract_strided_slice %43 {offsets = [0, 0], sizes = [16, 64], strides = [1, 1]} : vector<32x64xf32> to vector<16x64xf32>
    %cst_30 = arith.constant dense<0.000000e+00> : vector<64x128xf32>
    %47 = tpu.matmul %45, %10, %cst_30 {dimension_numbers = #tpu.dot_dimension_numbers<[0], [0], [1], [1], [0, 1, 1, 1], [], []>} : vector<16x64xf32>, vector<16x128xf32>, vector<64x128xf32> -> vector<64x128xf32>
    %48 = arith.mulf %47, %9 : vector<64x128xf32>
    %cst_31 = arith.constant dense<0.000000e+00> : vector<128x64xf32>
    %49 = tpu.matmul %10, %46, %cst_31 {dimension_numbers = #tpu.dot_dimension_numbers<[0], [0], [1], [1], [0, 1, 1, 1], [], []>} : vector<16x128xf32>, vector<16x64xf32>, vector<128x64xf32> -> vector<128x64xf32>
    %50 = arith.mulf %49, %6 : vector<128x64xf32>
    %cst_32 = arith.constant dense<0.000000e+00> : vector<16x128xf32>
    %51 = tpu.matmul %44, %48, %cst_32 {dimension_numbers = #tpu.dot_dimension_numbers<[1], [0], [0], [1], [0, 0, 1, 1], [], []>} : vector<16x64xf32>, vector<64x128xf32>, vector<16x128xf32> -> vector<16x128xf32>
    %cst_33 = arith.constant dense<0xFF800000> : vector<16xf32>
    %52 = vector.multi_reduction <maximumf>, %51, %cst_33 [1] : vector<16x128xf32> to vector<16xf32>
    %53 = vector.shape_cast %52 : vector<16xf32> to vector<16x1xf32>
    %54 = vector.broadcast %53 : vector<16x1xf32> to vector<16x128xf32>
    %55 = arith.subf %51, %54 : vector<16x128xf32>
    %56 = math.exp %55 : vector<16x128xf32>
    %cst_34 = arith.constant dense<0.000000e+00> : vector<16x128xf32>
    %57 = tpu.matmul %56, %8, %cst_34 {dimension_numbers = #tpu.dot_dimension_numbers<[1], [0], [0], [1], [0, 0, 1, 1], [], []>} : vector<16x128xf32>, vector<128x128xf32>, vector<16x128xf32> -> vector<16x128xf32>
    %58 = arith.divf %56, %57 : vector<16x128xf32>
    %cst_35 = arith.constant dense<0.000000e+00> : vector<16x64xf32>
    %59 = tpu.matmul %58, %50, %cst_35 {dimension_numbers = #tpu.dot_dimension_numbers<[1], [0], [0], [1], [0, 0, 1, 1], [], []>} : vector<16x128xf32>, vector<128x64xf32>, vector<16x64xf32> -> vector<16x64xf32>
    %60 = vector.extract_strided_slice %37 {offsets = [16, 0], sizes = [16, 64], strides = [1, 1]} : vector<32x64xf32> to vector<16x64xf32>
    %61 = vector.extract_strided_slice %40 {offsets = [16, 0], sizes = [16, 64], strides = [1, 1]} : vector<32x64xf32> to vector<16x64xf32>
    %62 = vector.extract_strided_slice %43 {offsets = [16, 0], sizes = [16, 64], strides = [1, 1]} : vector<32x64xf32> to vector<16x64xf32>
    %cst_36 = arith.constant dense<0.000000e+00> : vector<64x128xf32>
    %63 = tpu.matmul %61, %10, %cst_36 {dimension_numbers = #tpu.dot_dimension_numbers<[0], [0], [1], [1], [0, 1, 1, 1], [], []>} : vector<16x64xf32>, vector<16x128xf32>, vector<64x128xf32> -> vector<64x128xf32>
    %64 = arith.mulf %63, %9 : vector<64x128xf32>
    %cst_37 = arith.constant dense<0.000000e+00> : vector<128x64xf32>
    %65 = tpu.matmul %10, %62, %cst_37 {dimension_numbers = #tpu.dot_dimension_numbers<[0], [0], [1], [1], [0, 1, 1, 1], [], []>} : vector<16x128xf32>, vector<16x64xf32>, vector<128x64xf32> -> vector<128x64xf32>
    %66 = arith.mulf %65, %6 : vector<128x64xf32>
    %cst_38 = arith.constant dense<0.000000e+00> : vector<16x128xf32>
    %67 = tpu.matmul %60, %64, %cst_38 {dimension_numbers = #tpu.dot_dimension_numbers<[1], [0], [0], [1], [0, 0, 1, 1], [], []>} : vector<16x64xf32>, vector<64x128xf32>, vector<16x128xf32> -> vector<16x128xf32>
    %cst_39 = arith.constant dense<0xFF800000> : vector<16xf32>
    %68 = vector.multi_reduction <maximumf>, %67, %cst_39 [1] : vector<16x128xf32> to vector<16xf32>
    %69 = vector.shape_cast %68 : vector<16xf32> to vector<16x1xf32>
    %70 = vector.broadcast %69 : vector<16x1xf32> to vector<16x128xf32>
    %71 = arith.subf %67, %70 : vector<16x128xf32>
    %72 = math.exp %71 : vector<16x128xf32>
    %cst_40 = arith.constant dense<0.000000e+00> : vector<16x128xf32>
    %73 = tpu.matmul %72, %8, %cst_40 {dimension_numbers = #tpu.dot_dimension_numbers<[1], [0], [0], [1], [0, 0, 1, 1], [], []>} : vector<16x128xf32>, vector<128x128xf32>, vector<16x128xf32> -> vector<16x128xf32>
    %74 = arith.divf %72, %73 : vector<16x128xf32>
    %cst_41 = arith.constant dense<0.000000e+00> : vector<16x64xf32>
    %75 = tpu.matmul %74, %66, %cst_41 {dimension_numbers = #tpu.dot_dimension_numbers<[1], [0], [0], [1], [0, 0, 1, 1], [], []>} : vector<16x128xf32>, vector<128x64xf32>, vector<16x64xf32> -> vector<16x64xf32>
    %76 = tpu.concatenate %59, %75 in 0 : vector<16x64xf32>, vector<16x64xf32> -> vector<32x64xf32>
    %cst_42 = arith.constant dense<0.000000e+00> : vector<32x64xf32>
    %77 = tpu.matmul %76, %4, %cst_42 {dimension_numbers = #tpu.dot_dimension_numbers<[1], [0], [0], [1], [0, 0, 1, 1], [], []>} : vector<32x64xf32>, vector<64x64xf32>, vector<32x64xf32> -> vector<32x64xf32>
    %78 = vector.broadcast %14 : vector<1x64xf32> to vector<32x64xf32>
    %79 = arith.addf %77, %78 : vector<32x64xf32>
    %80 = arith.addf %0, %79 : vector<32x64xf32>
    %cst_43 = arith.constant dense<0.000000e+00> : vector<32xf32>
    %81 = vector.multi_reduction <add>, %80, %cst_43 [1] : vector<32x64xf32> to vector<32xf32>
    %82 = vector.shape_cast %81 : vector<32xf32> to vector<32x1xf32>
    %cst_44 = arith.constant 6.400000e+01 : f32
    %83 = vector.broadcast %cst_44 : f32 to vector<32x1xf32>
    %84 = arith.divf %82, %83 : vector<32x1xf32>
    %85 = vector.broadcast %84 : vector<32x1xf32> to vector<32x64xf32>
    %86 = arith.subf %80, %85 : vector<32x64xf32>
    %87 = arith.mulf %86, %86 : vector<32x64xf32>
    %cst_45 = arith.constant dense<0.000000e+00> : vector<32xf32>
    %88 = vector.multi_reduction <add>, %87, %cst_45 [1] : vector<32x64xf32> to vector<32xf32>
    %89 = vector.shape_cast %88 : vector<32xf32> to vector<32x1xf32>
    %cst_46 = arith.constant 6.400000e+01 : f32
    %90 = vector.broadcast %cst_46 : f32 to vector<32x1xf32>
    %91 = arith.divf %89, %90 : vector<32x1xf32>
    %92 = vector.broadcast %84 : vector<32x1xf32> to vector<32x64xf32>
    %93 = arith.subf %80, %92 : vector<32x64xf32>
    %cst_47 = arith.constant 9.99999974E-6 : f32
    %94 = vector.broadcast %cst_47 : f32 to vector<32x1xf32>
    %95 = arith.addf %91, %94 : vector<32x1xf32>
    %96 = math.rsqrt %95 : vector<32x1xf32>
    %97 = vector.broadcast %96 : vector<32x1xf32> to vector<32x64xf32>
    %98 = arith.mulf %93, %97 : vector<32x64xf32>
    %cst_48 = arith.constant dense<0.000000e+00> : vector<32x128xf32>
    %99 = tpu.matmul %98, %7, %cst_48 {dimension_numbers = #tpu.dot_dimension_numbers<[1], [0], [0], [1], [0, 0, 1, 1], [], []>} : vector<32x64xf32>, vector<64x128xf32>, vector<32x128xf32> -> vector<32x128xf32>
    %100 = vector.broadcast %16 : vector<1x128xf32> to vector<32x128xf32>
    %101 = arith.addf %99, %100 : vector<32x128xf32>
    %cst_49 = arith.constant 0.000000e+00 : f32
    %102 = vector.broadcast %cst_49 : f32 to vector<32x128xf32>
    %103 = arith.maximumf %101, %102 : vector<32x128xf32>
    %cst_50 = arith.constant dense<0.000000e+00> : vector<32x64xf32>
    %104 = tpu.matmul %103, %5, %cst_50 {dimension_numbers = #tpu.dot_dimension_numbers<[1], [0], [0], [1], [0, 0, 1, 1], [], []>} : vector<32x128xf32>, vector<128x64xf32>, vector<32x64xf32> -> vector<32x64xf32>
    %105 = vector.broadcast %15 : vector<1x64xf32> to vector<32x64xf32>
    %106 = arith.addf %104, %105 : vector<32x64xf32>
    %107 = arith.addf %80, %106 : vector<32x64xf32>
    %108 = vector.extract_strided_slice %107 {offsets = [0, 0], sizes = [16, 64], strides = [1, 1]} : vector<32x64xf32> to vector<16x64xf32>
    %109 = vector.extract_strided_slice %107 {offsets = [16, 0], sizes = [16, 64], strides = [1, 1]} : vector<32x64xf32> to vector<16x64xf32>
    %110 = tpu.concatenate %108, %109 in 1 : vector<16x64xf32>, vector<16x64xf32> -> vector<16x128xf32>
    %c0_51 = arith.constant 0 : index
    %c0_52 = arith.constant 0 : index
    %111 = vector.load %arg5[%c0_51, %c0_52] : memref<16x128xf32, #tpu.memory_space<vmem>>, vector<16x128xf32>
    tpu.vector_store %arg5[%c0_51, %c0_52], %110 {strides = array<i32>} : memref<16x128xf32, #tpu.memory_space<vmem>>, vector<16x128xf32>,
    return
  }
  func.func @transform_0(%arg0: i32) -> (i32, i32) {
    %c0_i32 = arith.constant 0 : i32
    %c0_i32_0 = arith.constant 0 : i32
    %c0_i32_1 = arith.constant 0 : i32
    return %c0_i32, %c0_i32_0 : i32, i32
  }
  func.func @transform_1(%arg0: i32) -> (i32, i32) {
    %c0_i32 = arith.constant 0 : i32
    %c0_i32_0 = arith.constant 0 : i32
    %c0_i32_1 = arith.constant 0 : i32
    return %c0_i32, %c0_i32_0 : i32, i32
  }
  func.func @transform_2(%arg0: i32) -> (i32, i32) {
    %c0_i32 = arith.constant 0 : i32
    %c0_i32_0 = arith.constant 0 : i32
    %c0_i32_1 = arith.constant 0 : i32
    return %c0_i32, %c0_i32_0 : i32, i32
  }
  func.func @transform_3(%arg0: i32) -> (i32, i32) {
    %c0_i32 = arith.constant 0 : i32
    %c0_i32_0 = arith.constant 0 : i32
    %c0_i32_1 = arith.constant 0 : i32
    return %c0_i32, %c0_i32_0 : i32, i32
  }
  func.func @transform_4(%arg0: i32) -> (i32, i32) {
    %c0_i32 = arith.constant 0 : i32
    %c0_i32_0 = arith.constant 0 : i32
    %c0_i32_1 = arith.constant 0 : i32
    return %c0_i32, %c0_i32_0 : i32, i32
  }
}

</mosaic_0001>

<llo_original>
// kernel: tpu_custom_call.1
$region0: #{tpu_custom_call.1}
  #allocation0 [shape = 'u32[]', space=smem, size = 0x4, offset = 0x4, fixed_abs, tag = 'smem constant byte address 0x4 - core index']
  #allocation1 [shape = 'u32[144,128]{1,0:T(1,128)}', space=vmem, size = 0x12000, scoped, tag = 'internal scratch']
  %s0 = inlined_call_operand.vmem [shape: f32[32,64], index: 0, kind: input, shape index: {}]
  %s1 = inlined_call_operand.vmem [shape: f32[512,64], index: 1, kind: input, shape index: {}]
  %s2 = inlined_call_operand.vmem [shape: f32[272,128], index: 2, kind: input, shape index: {}]
  %s3 = inlined_call_operand.vmem [shape: f32[8,128], index: 3, kind: input, shape index: {}]
  %s4 = inlined_call_operand.hbm [shape: f32[16,128], index: 4, kind: output, shape index: {}]
  %s5 = sld [smem:[#allocation0]]
  $region26: #{tpu_custom_call.1} parent=0
    _
  %s7 = ssub.s32 1, %s5
  %s8 = scalar_select 0, %s7, %s5
  $region1: #{tpu_custom_call.1} parent=0
    #allocation2 [shape = 'u8[8192]{0}', space=vmem, size = 0x2000, scoped, tag = 'output window, operand 0, single buffered']
    #allocation3 [shape = 's32[1]{0}', space=sflag, size = 0x4, scoped, tag = 'scoped memory for tpu_custom_call.1']
    %9 = vsyncpa [#allocation3], 0
    // Predicated region
    $region2: #{tpu_custom_call.1} parent=1 // pred_check
      _
    $region3: #{tpu_custom_call.1} parent=1 // pred_check_branch
      %11 = sbr.rel (0) target = $region5
    $region4: #{tpu_custom_call.1} parent=1 // pred_region
      _
    $region5: #{tpu_custom_call.1} parent=1 // pred_fallthru
      _
    // Predicated region
    $region6: #{tpu_custom_call.1} parent=1 // pred_check
      _
    $region7: #{tpu_custom_call.1} parent=1 // pred_check_branch
      %13 = sbr.rel (0) target = $region9
    $region8: #{tpu_custom_call.1} parent=1 // pred_region
      _
    $region9: #{tpu_custom_call.1} parent=1 // pred_fallthru
      _
    // Predicated region
    $region10: #{tpu_custom_call.1} parent=1 // pred_check
      _
    $region11: #{tpu_custom_call.1} parent=1 // pred_check_branch
      %15 = sbr.rel (0) target = $region13
    $region12: #{tpu_custom_call.1} parent=1 // pred_region
      _
    $region13: #{tpu_custom_call.1} parent=1 // pred_fallthru
      _
    // Predicated region
    $region14: #{tpu_custom_call.1} parent=1 // pred_check
      _
    $region15: #{tpu_custom_call.1} parent=1 // pred_check_branch
      %17 = sbr.rel (0) target = $region17
    $region16: #{tpu_custom_call.1} parent=1 // pred_region
      _
    $region17: #{tpu_custom_call.1} parent=1 // pred_fallthru
      _
    %v18 = vld [vmem:[%s0] sm:$0xff]
    %v19 = vld [vmem:[%s0 + $0x8] sm:$0xff]
    %v20 = vld [vmem:[%s0 + $0x10] sm:$0xff]
    %v21 = vld [vmem:[%s0 + $0x18] sm:$0xff]
    %v22 = vld [vmem:[%s1] sm:$0xff]
    %v23 = vld [vmem:[%s1 + $0x8] sm:$0xff]
    %v24 = vld [vmem:[%s1 + $0x10] sm:$0xff]
    %v25 = vld [vmem:[%s1 + $0x18] sm:$0xff]
    %v26 = vld [vmem:[%s1 + $0x20] sm:$0xff]
    %v27 = vld [vmem:[%s1 + $0x28] sm:$0xff]
    %v28 = vld [vmem:[%s1 + $0x30] sm:$0xff]
    %v29 = vld [vmem:[%s1 + $0x38] sm:$0xff]
    %v30 = vld [vmem:[%s1 + $0x40] sm:$0xff]
    %v31 = vld [vmem:[%s1 + $0x48] sm:$0xff]
    %v32 = vld [vmem:[%s1 + $0x50] sm:$0xff]
    %v33 = vld [vmem:[%s1 + $0x58] sm:$0xff]
    %v34 = vld [vmem:[%s1 + $0x60] sm:$0xff]
    %v35 = vld [vmem:[%s1 + $0x68] sm:$0xff]
    %v36 = vld [vmem:[%s1 + $0x70] sm:$0xff]
    %v37 = vld [vmem:[%s1 + $0x78] sm:$0xff]
    %v38 = vld [vmem:[%s1 + $0x80] sm:$0xff]
    %v39 = vld [vmem:[%s1 + $0x88] sm:$0xff]
    %v40 = vld [vmem:[%s1 + $0x90] sm:$0xff]
    %v41 = vld [vmem:[%s1 + $0x98] sm:$0xff]
    %v42 = vld [vmem:[%s1 + $0xa0] sm:$0xff]
    %v43 = vld [vmem:[%s1 + $0xa8] sm:$0xff]
    %v44 = vld [vmem:[%s1 + $0xb0] sm:$0xff]
    %v45 = vld [vmem:[%s1 + $0xb8] sm:$0xff]
    %v46 = vld [vmem:[%s1 + $0xc0] sm:$0xff]
    %v47 = vld [vmem:[%s1 + $0xc8] sm:$0xff]
    %v48 = vld [vmem:[%s1 + $0xd0] sm:$0xff]
    %v49 = vld [vmem:[%s1 + $0xd8] sm:$0xff]
    %v50 = vld [vmem:[%s1 + $0xe0] sm:$0xff]
    %v51 = vld [vmem:[%s1 + $0xe8] sm:$0xff]
    %v52 = vld [vmem:[%s1 + $0xf0] sm:$0xff]
    %v53 = vld [vmem:[%s1 + $0xf8] sm:$0xff]
    %v54 = vld [vmem:[%s1 + $0x100] sm:$0xff]
    %v55 = vld [vmem:[%s1 + $0x108] sm:$0xff]
    %v56 = vld [vmem:[%s1 + $0x110] sm:$0xff]
    %v57 = vld [vmem:[%s1 + $0x118] sm:$0xff]
    %v58 = vld [vmem:[%s1 + $0x120] sm:$0xff]
    %v59 = vld [vmem:[%s1 + $0x128] sm:$0xff]
    %v60 = vld [vmem:[%s1 + $0x130] sm:$0xff]
    %v61 = vld [vmem:[%s1 + $0x138] sm:$0xff]
    %v62 = vld [vmem:[%s1 + $0x140] sm:$0xff]
    %v63 = vld [vmem:[%s1 + $0x148] sm:$0xff]
    %v64 = vld [vmem:[%s1 + $0x150] sm:$0xff]
    %v65 = vld [vmem:[%s1 + $0x158] sm:$0xff]
    %v66 = vld [vmem:[%s1 + $0x160] sm:$0xff]
    %v67 = vld [vmem:[%s1 + $0x168] sm:$0xff]
    %v68 = vld [vmem:[%s1 + $0x170] sm:$0xff]
    %v69 = vld [vmem:[%s1 + $0x178] sm:$0xff]
    %v70 = vld [vmem:[%s1 + $0x180] sm:$0xff]
    %v71 = vld [vmem:[%s1 + $0x188] sm:$0xff]
    %v72 = vld [vmem:[%s1 + $0x190] sm:$0xff]
    %v73 = vld [vmem:[%s1 + $0x198] sm:$0xff]
    %v74 = vld [vmem:[%s1 + $0x1a0] sm:$0xff]
    %v75 = vld [vmem:[%s1 + $0x1a8] sm:$0xff]
    %v76 = vld [vmem:[%s1 + $0x1b0] sm:$0xff]
    %v77 = vld [vmem:[%s1 + $0x1b8] sm:$0xff]
    %v78 = vld [vmem:[%s1 + $0x1c0] sm:$0xff]
    %v79 = vld [vmem:[%s1 + $0x1c8] sm:$0xff]
    %v80 = vld [vmem:[%s1 + $0x1d0] sm:$0xff]
    %v81 = vld [vmem:[%s1 + $0x1d8] sm:$0xff]
    %v82 = vld [vmem:[%s1 + $0x1e0] sm:$0xff]
    %v83 = vld [vmem:[%s1 + $0x1e8] sm:$0xff]
    %v84 = vld [vmem:[%s1 + $0x1f0] sm:$0xff]
    %v85 = vld [vmem:[%s1 + $0x1f8] sm:$0xff]
    %v86 = vld [vmem:[%s2] sm:$0xff]
    %v87 = vld [vmem:[%s2 + $0x8] sm:$0xff]
    %v88 = vld [vmem:[%s2 + $0x10] sm:$0xff]
    %v89 = vld [vmem:[%s2 + $0x18] sm:$0xff]
    %v90 = vld [vmem:[%s2 + $0x20] sm:$0xff]
    %v91 = vld [vmem:[%s2 + $0x28] sm:$0xff]
    %v92 = vld [vmem:[%s2 + $0x30] sm:$0xff]
    %v93 = vld [vmem:[%s2 + $0x38] sm:$0xff]
    %v94 = vld [vmem:[%s2 + $0x40] sm:$0xff]
    %v95 = vld [vmem:[%s2 + $0x48] sm:$0xff]
    %v96 = vld [vmem:[%s2 + $0x50] sm:$0xff]
    %v97 = vld [vmem:[%s2 + $0x58] sm:$0xff]
    %v98 = vld [vmem:[%s2 + $0x60] sm:$0xff]
    %v99 = vld [vmem:[%s2 + $0x68] sm:$0xff]
    %v100 = vld [vmem:[%s2 + $0x70] sm:$0xff]
    %v101 = vld [vmem:[%s2 + $0x78] sm:$0xff]
    %v102 = vld [vmem:[%s2 + $0x80] sm:$0xff]
    %v103 = vld [vmem:[%s2 + $0x88] sm:$0xff]
    %v104 = vld [vmem:[%s2 + $0x90] sm:$0xff]
    %v105 = vld [vmem:[%s2 + $0x98] sm:$0xff]
    %v106 = vld [vmem:[%s2 + $0xa0] sm:$0xff]
    %v107 = vld [vmem:[%s2 + $0xa8] sm:$0xff]
    %v108 = vld [vmem:[%s2 + $0xb0] sm:$0xff]
    %v109 = vld [vmem:[%s2 + $0xb8] sm:$0xff]
    %v110 = vld [vmem:[%s2 + $0xc0] sm:$0xff]
    %v111 = vld [vmem:[%s2 + $0xc8] sm:$0xff]
    %v112 = vld [vmem:[%s2 + $0xd0] sm:$0xff]
    %v113 = vld [vmem:[%s2 + $0xd8] sm:$0xff]
    %v114 = vld [vmem:[%s2 + $0xe0] sm:$0xff]
    %v115 = vld [vmem:[%s2 + $0xe8] sm:$0xff]
    %v116 = vld [vmem:[%s2 + $0xf0] sm:$0xff]
    %v117 = vld [vmem:[%s2 + $0xf8] sm:$0xff]
    %v118 = vld [vmem:[%s2 + $0x100] sm:$0xff]
    %v119 = vld [vmem:[%s2 + $0x108] sm:$0xff]
    %v120 = vld [vmem:[%s3] sm:$0x1]
    %v121 = vld [vmem:[%s3 + $0x1] sm:$0x1]
    %v122 = vld [vmem:[%s3 + $0x2] sm:$0x1]
    %v123 = vld [vmem:[%s3 + $0x3] sm:$0x1]
    %v124 = vld [vmem:[%s3 + $0x4] sm:$0x1]
    %v125 = vld [vmem:[%s3 + $0x5] sm:$0x1]
    %vm126 = vcmask 523264
    %v127 = vsel %vm126, %v18, 0.0
    %128 = vadd.xlane.f32.xlu0 %v127
    %v129 = vpop.xlane.xlu0 %128
    %v130 = vsel %vm126, %v19, 0.0
    %131 = vadd.xlane.f32.xlu0 %v130
    %v132 = vpop.xlane.xlu0 %131
    %v133 = vsel %vm126, %v20, 0.0
    %134 = vadd.xlane.f32.xlu0 %v133
    %v135 = vpop.xlane.xlu0 %134
    %v136 = vsel %vm126, %v21, 0.0
    %137 = vadd.xlane.f32.xlu0 %v136
    %v138 = vpop.xlane.xlu0 %137
    %v139 = vrcp.pop 64.0
    %v140 = vmul.f32 %v129, %v139
    %v141 = vmul.f32 %v132, %v139
    %v142 = vmul.f32 %v135, %v139
    %v143 = vmul.f32 %v138, %v139
    %v144 = vsub.f32 %v18, %v140
    %v145 = vsub.f32 %v19, %v141
    %v146 = vsub.f32 %v20, %v142
    %v147 = vsub.f32 %v21, %v143
    %v148 = vmul.f32 %v144, %v144
    %v149 = vmul.f32 %v145, %v145
    %v150 = vmul.f32 %v146, %v146
    %v151 = vmul.f32 %v147, %v147
    %v152 = vsel %vm126, %v148, 0.0
    %153 = vadd.xlane.f32.xlu0 %v152
    %v154 = vpop.xlane.xlu0 %153
    %v155 = vsel %vm126, %v149, 0.0
    %156 = vadd.xlane.f32.xlu0 %v155
    %v157 = vpop.xlane.xlu0 %156
    %v158 = vsel %vm126, %v150, 0.0
    %159 = vadd.xlane.f32.xlu0 %v158
    %v160 = vpop.xlane.xlu0 %159
    %v161 = vsel %vm126, %v151, 0.0
    %162 = vadd.xlane.f32.xlu0 %v161
    %v163 = vpop.xlane.xlu0 %162
    %v164 = vmul.f32 %v154, %v139
    %v165 = vmul.f32 %v157, %v139
    %v166 = vmul.f32 %v160, %v139
    %v167 = vmul.f32 %v163, %v139
    %v168 = vadd.f32 %v164, 1e-05
    %v169 = vadd.f32 %v165, 1e-05
    %v170 = vadd.f32 %v166, 1e-05
    %v171 = vadd.f32 %v167, 1e-05
    %v172 = vrsqrt.pop %v168
    %v173 = vrsqrt.pop %v169
    %v174 = vrsqrt.pop %v170
    %v175 = vrsqrt.pop %v171
    %v176 = vmul.f32 %v144, %v172
    %v177 = vmul.f32 %v145, %v173
    %v178 = vmul.f32 %v146, %v174
    %v179 = vmul.f32 %v147, %v175
    %v180 = vlaneseq
    %v181 = vshrl.u32 %v180, 7
    %v182 = vsub.s32 0, %v181
    %v183 = vrot.slane %v120, %v182
    %v185 = vsel %vm126, %v176, 0
    %v188 = vsel %vm126, %v177, 0
    %v191 = vsel %vm126, %v178, 0
    %v194 = vsel %vm126, %v179, 0
    %196 = vmatprep.subr.mxu0 0.0
    %197 = vmatpush1.msra.mxu0 %v22
    %198 = vmatprep.subr.mxu0 0.0
    %199 = vmatpush1.msra.mxu0 %v23
    %200 = vmatprep.subr.mxu0 0.0
    %201 = vmatpush1.msra.mxu0 %v24
    %202 = vmatprep.subr.mxu0 0.0
    %203 = vmatpush1.msra.mxu0 %v25
    %204 = vmatprep.subr.mxu0 0.0
    %205 = vmatpush1.msra.mxu0 %v26
    %206 = vmatprep.subr.mxu0 0.0
    %207 = vmatpush1.msra.mxu0 %v27
    %208 = vmatprep.subr.mxu0 0.0
    %209 = vmatpush1.msra.mxu0 %v28
    %210 = vmatprep.subr.mxu0 0.0
    %211 = vmatpush1.msra.mxu0 %v29
    %212 = vmatprep.subr.mxu0 0.0
    %213 = vmatpush1.msra.mxu0 0.0
    %214 = vmatprep.subr.mxu0 0.0
    %215 = vmatpush1.msra.mxu0 0.0
    %216 = vmatprep.subr.mxu0 0.0
    %217 = vmatpush1.msra.mxu0 0.0
    %218 = vmatprep.subr.mxu0 0.0
    %219 = vmatpush1.msra.mxu0 0.0
    %220 = vmatprep.subr.mxu0 0.0
    %221 = vmatpush1.msra.mxu0 0.0
    %222 = vmatprep.subr.mxu0 0.0
    %223 = vmatpush1.msra.mxu0 0.0
    %224 = vmatprep.subr.mxu0 0.0
    %225 = vmatpush1.msra.mxu0 0.0
    %226 = vmatprep.subr.mxu0 0.0
    %227 = vmatpush1.msra.mxu0 0.0
    %228 = vmatprep.subr.mxu0 0.0
    %229 = vmatpush1.msra.mxu0 0.0
    %230 = vmatprep.subr.mxu0 0.0
    %231 = vmatpush1.msra.mxu0 0.0
    %232 = vmatprep.subr.mxu0 0.0
    %233 = vmatpush1.msra.mxu0 0.0
    %234 = vmatprep.subr.mxu0 0.0
    %235 = vmatpush1.msra.mxu0 0.0
    %236 = vmatprep.subr.mxu0 0.0
    %237 = vmatpush1.msra.mxu0 0.0
    %238 = vmatprep.subr.mxu0 0.0
    %239 = vmatpush1.msra.mxu0 0.0
    %240 = vmatprep.subr.mxu0 0.0
    %241 = vmatpush1.msra.mxu0 0.0
    %242 = vmatprep.subr.mxu0 0.0
    %243 = vmatpush1.msra.mxu0 0.0
    %244 = vmatprep.subr.mxu0 0.0
    %245 = vmatpush1.msra.mxu0 0.0
    %246 = vmatprep.subr.mxu0 0.0
    %247 = vmatpush1.msra.mxu0 0.0
    %248 = vmatprep.subr.mxu0 0.0
    %249 = vmatpush1.msra.mxu0 0.0
    %250 = vmatprep.subr.mxu0 0.0
    %251 = vmatpush1.msra.mxu0 0.0
    %252 = vmatprep.subr.mxu0 0.0
    %253 = vmatpush1.msra.mxu0 0.0
    %254 = vmatprep.subr.mxu0 0.0
    %255 = vmatpush1.msra.mxu0 0.0
    %256 = vmatprep.subr.mxu0 0.0
    %257 = vmatpush1.msra.mxu0 0.0
    %258 = vmatprep.subr.mxu0 0.0
    %259 = vmatpush1.msra.mxu0 0.0
    %260 = vmatprep.mubr.f32.mxu0 0.0
    %261 = vmatmul.mubr.f32.gmra.mrb[0].mxu0 %v185
    %v262 = vpop.f32.mrb[0].mxu0
    %v263 = vadd.f32 %v183, %v262
    %v264 = vpop.f32.mrb[0].mxu0
    %265 = vmatprep.mubr.f32.mxu0 0.0
    %266 = vmatmul.mubr.f32.gmra.mrb[0].mxu0 %v188
    %v267 = vpop.f32.mrb[0].mxu0
    %v268 = vadd.f32 %v183, %v267
    %v269 = vpop.f32.mrb[0].mxu0
    %270 = vmatprep.mubr.f32.mxu0 0.0
    %271 = vmatmul.mubr.f32.gmra.mrb[0].mxu0 %v191
    %v272 = vpop.f32.mrb[0].mxu0
    %v273 = vadd.f32 %v183, %v272
    %v274 = vpop.f32.mrb[0].mxu0
    %275 = vmatprep.mubr.f32.mxu0 0.0
    %276 = vmatmul.mubr.f32.gmra.mrb[0].mxu0 %v194
    %v277 = vpop.f32.mrb[0].mxu0
    %v278 = vadd.f32 %v183, %v277
    %v279 = vpop.f32.mrb[0].mxu0
    %280 = vdwg.mxu0
    %v281 = vlaneseq
    %v282 = vshrl.u32 %v281, 7
    %v283 = vsub.s32 0, %v282
    %v284 = vrot.slane %v121, %v283
    %285 = vmatprep.subr.mxu0 0.0
    %286 = vmatpush1.msra.mxu0 %v30
    %287 = vmatprep.subr.mxu0 0.0
    %288 = vmatpush1.msra.mxu0 %v31
    %289 = vmatprep.subr.mxu0 0.0
    %290 = vmatpush1.msra.mxu0 %v32
    %291 = vmatprep.subr.mxu0 0.0
    %292 = vmatpush1.msra.mxu0 %v33
    %293 = vmatprep.subr.mxu0 0.0
    %294 = vmatpush1.msra.mxu0 %v34
    %295 = vmatprep.subr.mxu0 0.0
    %296 = vmatpush1.msra.mxu0 %v35
    %297 = vmatprep.subr.mxu0 0.0
    %298 = vmatpush1.msra.mxu0 %v36
    %299 = vmatprep.subr.mxu0 0.0
    %300 = vmatpush1.msra.mxu0 %v37
    %301 = vmatprep.subr.mxu0 0.0
    %302 = vmatpush1.msra.mxu0 0.0
    %303 = vmatprep.subr.mxu0 0.0
    %304 = vmatpush1.msra.mxu0 0.0
    %305 = vmatprep.subr.mxu0 0.0
    %306 = vmatpush1.msra.mxu0 0.0
    %307 = vmatprep.subr.mxu0 0.0
    %308 = vmatpush1.msra.mxu0 0.0
    %309 = vmatprep.subr.mxu0 0.0
    %310 = vmatpush1.msra.mxu0 0.0
    %311 = vmatprep.subr.mxu0 0.0
    %312 = vmatpush1.msra.mxu0 0.0
    %313 = vmatprep.subr.mxu0 0.0
    %314 = vmatpush1.msra.mxu0 0.0
    %315 = vmatprep.subr.mxu0 0.0
    %316 = vmatpush1.msra.mxu0 0.0
    %317 = vmatprep.subr.mxu0 0.0
    %318 = vmatpush1.msra.mxu0 0.0
    %319 = vmatprep.subr.mxu0 0.0
    %320 = vmatpush1.msra.mxu0 0.0
    %321 = vmatprep.subr.mxu0 0.0
    %322 = vmatpush1.msra.mxu0 0.0
    %323 = vmatprep.subr.mxu0 0.0
    %324 = vmatpush1.msra.mxu0 0.0
    %325 = vmatprep.subr.mxu0 0.0
    %326 = vmatpush1.msra.mxu0 0.0
    %327 = vmatprep.subr.mxu0 0.0
    %328 = vmatpush1.msra.mxu0 0.0
    %329 = vmatprep.subr.mxu0 0.0
    %330 = vmatpush1.msra.mxu0 0.0
    %331 = vmatprep.subr.mxu0 0.0
    %332 = vmatpush1.msra.mxu0 0.0
    %333 = vmatprep.subr.mxu0 0.0
    %334 = vmatpush1.msra.mxu0 0.0
    %335 = vmatprep.subr.mxu0 0.0
    %336 = vmatpush1.msra.mxu0 0.0
    %337 = vmatprep.subr.mxu0 0.0
    %338 = vmatpush1.msra.mxu0 0.0
    %339 = vmatprep.subr.mxu0 0.0
    %340 = vmatpush1.msra.mxu0 0.0
    %341 = vmatprep.subr.mxu0 0.0
    %342 = vmatpush1.msra.mxu0 0.0
    %343 = vmatprep.subr.mxu0 0.0
    %344 = vmatpush1.msra.mxu0 0.0
    %345 = vmatprep.subr.mxu0 0.0
    %346 = vmatpush1.msra.mxu0 0.0
    %347 = vmatprep.subr.mxu0 0.0
    %348 = vmatpush1.msra.mxu0 0.0
    %349 = vmatprep.mubr.f32.mxu0 0.0
    %350 = vmatmul.mubr.f32.gmra.mrb[0].mxu0 %v185
    %v351 = vpop.f32.mrb[0].mxu0
    %v352 = vadd.f32 %v284, %v351
    %v353 = vpop.f32.mrb[0].mxu0
    %354 = vmatprep.mubr.f32.mxu0 0.0
    %355 = vmatmul.mubr.f32.gmra.mrb[0].mxu0 %v188
    %v356 = vpop.f32.mrb[0].mxu0
    %v357 = vadd.f32 %v284, %v356
    %v358 = vpop.f32.mrb[0].mxu0
    %359 = vmatprep.mubr.f32.mxu0 0.0
    %360 = vmatmul.mubr.f32.gmra.mrb[0].mxu0 %v191
    %v361 = vpop.f32.mrb[0].mxu0
    %v362 = vadd.f32 %v284, %v361
    %v363 = vpop.f32.mrb[0].mxu0
    %364 = vmatprep.mubr.f32.mxu0 0.0
    %365 = vmatmul.mubr.f32.gmra.mrb[0].mxu0 %v194
    %v366 = vpop.f32.mrb[0].mxu0
    %v367 = vadd.f32 %v284, %v366
    %v368 = vpop.f32.mrb[0].mxu0
    %369 = vdwg.mxu0
    %v370 = vlaneseq
    %v371 = vshrl.u32 %v370, 7
    %v372 = vsub.s32 0, %v371
    %v373 = vrot.slane %v122, %v372
    %374 = vmatprep.subr.mxu0 0.0
    %375 = vmatpush1.msra.mxu0 %v38
    %376 = vmatprep.subr.mxu0 0.0
    %377 = vmatpush1.msra.mxu0 %v39
    %378 = vmatprep.subr.mxu0 0.0
    %379 = vmatpush1.msra.mxu0 %v40
    %380 = vmatprep.subr.mxu0 0.0
    %381 = vmatpush1.msra.mxu0 %v41
    %382 = vmatprep.subr.mxu0 0.0
    %383 = vmatpush1.msra.mxu0 %v42
    %384 = vmatprep.subr.mxu0 0.0
    %385 = vmatpush1.msra.mxu0 %v43
    %386 = vmatprep.subr.mxu0 0.0
    %387 = vmatpush1.msra.mxu0 %v44
    %388 = vmatprep.subr.mxu0 0.0
    %389 = vmatpush1.msra.mxu0 %v45
    %390 = vmatprep.subr.mxu0 0.0
    %391 = vmatpush1.msra.mxu0 0.0
    %392 = vmatprep.subr.mxu0 0.0
    %393 = vmatpush1.msra.mxu0 0.0
    %394 = vmatprep.subr.mxu0 0.0
    %395 = vmatpush1.msra.mxu0 0.0
    %396 = vmatprep.subr.mxu0 0.0
    %397 = vmatpush1.msra.mxu0 0.0
    %398 = vmatprep.subr.mxu0 0.0
    %399 = vmatpush1.msra.mxu0 0.0
    %400 = vmatprep.subr.mxu0 0.0
    %401 = vmatpush1.msra.mxu0 0.0
    %402 = vmatprep.subr.mxu0 0.0
    %403 = vmatpush1.msra.mxu0 0.0
    %404 = vmatprep.subr.mxu0 0.0
    %405 = vmatpush1.msra.mxu0 0.0
    %406 = vmatprep.subr.mxu0 0.0
    %407 = vmatpush1.msra.mxu0 0.0
    %408 = vmatprep.subr.mxu0 0.0
    %409 = vmatpush1.msra.mxu0 0.0
    %410 = vmatprep.subr.mxu0 0.0
    %411 = vmatpush1.msra.mxu0 0.0
    %412 = vmatprep.subr.mxu0 0.0
    %413 = vmatpush1.msra.mxu0 0.0
    %414 = vmatprep.subr.mxu0 0.0
    %415 = vmatpush1.msra.mxu0 0.0
    %416 = vmatprep.subr.mxu0 0.0
    %417 = vmatpush1.msra.mxu0 0.0
    %418 = vmatprep.subr.mxu0 0.0
    %419 = vmatpush1.msra.mxu0 0.0
    %420 = vmatprep.subr.mxu0 0.0
    %421 = vmatpush1.msra.mxu0 0.0
    %422 = vmatprep.subr.mxu0 0.0
    %423 = vmatpush1.msra.mxu0 0.0
    %424 = vmatprep.subr.mxu0 0.0
    %425 = vmatpush1.msra.mxu0 0.0
    %426 = vmatprep.subr.mxu0 0.0
    %427 = vmatpush1.msra.mxu0 0.0
    %428 = vmatprep.subr.mxu0 0.0
    %429 = vmatpush1.msra.mxu0 0.0
    %430 = vmatprep.subr.mxu0 0.0
    %431 = vmatpush1.msra.mxu0 0.0
    %432 = vmatprep.subr.mxu0 0.0
    %433 = vmatpush1.msra.mxu0 0.0
    %434 = vmatprep.subr.mxu0 0.0
    %435 = vmatpush1.msra.mxu0 0.0
    %436 = vmatprep.subr.mxu0 0.0
    %437 = vmatpush1.msra.mxu0 0.0
    %438 = vmatprep.mubr.f32.mxu0 0.0
    %439 = vmatmul.mubr.f32.gmra.mrb[0].mxu0 %v185
    %v440 = vpop.f32.mrb[0].mxu0
    %v441 = vadd.f32 %v373, %v440
    %v442 = vpop.f32.mrb[0].mxu0
    %443 = vmatprep.mubr.f32.mxu0 0.0
    %444 = vmatmul.mubr.f32.gmra.mrb[0].mxu0 %v188
    %v445 = vpop.f32.mrb[0].mxu0
    %v446 = vadd.f32 %v373, %v445
    %v447 = vpop.f32.mrb[0].mxu0
    %448 = vmatprep.mubr.f32.mxu0 0.0
    %449 = vmatmul.mubr.f32.gmra.mrb[0].mxu0 %v191
    %v450 = vpop.f32.mrb[0].mxu0
    %v451 = vadd.f32 %v373, %v450
    %v452 = vpop.f32.mrb[0].mxu0
    %453 = vmatprep.mubr.f32.mxu0 0.0
    %454 = vmatmul.mubr.f32.gmra.mrb[0].mxu0 %v194
    %v455 = vpop.f32.mrb[0].mxu0
    %v456 = vadd.f32 %v373, %v455
    %v457 = vpop.f32.mrb[0].mxu0
    %458 = vdwg.mxu0
    %459 = vxpose.xlu0.b32.start [1/16] %v352, 128
    %460 = vxpose.xlu0.b32.cont [2/16] %v357, 128
    %461 = vxpose.xlu0.b32.cont [3/16] 0.0, 128
    %462 = vxpose.xlu0.b32.cont [4/16] 0.0, 128
    %463 = vxpose.xlu0.b32.cont [5/16] 0.0, 128
    %464 = vxpose.xlu0.b32.cont [6/16] 0.0, 128
    %465 = vxpose.xlu0.b32.cont [7/16] 0.0, 128
    %466 = vxpose.xlu0.b32.cont [8/16] 0.0, 128
    %467 = vxpose.xlu0.b32.cont [9/16] 0.0, 128
    %468 = vxpose.xlu0.b32.cont [10/16] 0.0, 128
    %469 = vxpose.xlu0.b32.cont [11/16] 0.0, 128
    %470 = vxpose.xlu0.b32.cont [12/16] 0.0, 128
    %471 = vxpose.xlu0.b32.cont [13/16] 0.0, 128
    %472 = vxpose.xlu0.b32.cont [14/16] 0.0, 128
    %473 = vxpose.xlu0.b32.cont [15/16] 0.0, 128
    %474 = vxpose.xlu0.b32.end [16/16] 0.0, 128
    %v475 = vpop.trf.xlu0
    %v476 = vpop.trf.xlu0
    %v477 = vpop.trf.xlu0
    %v478 = vpop.trf.xlu0
    %v479 = vpop.trf.xlu0
    %v480 = vpop.trf.xlu0
    %v481 = vpop.trf.xlu0
    %v482 = vpop.trf.xlu0
    %v483 = vpop.trf.xlu0
    %v484 = vpop.trf.xlu0
    %v485 = vpop.trf.xlu0
    %v486 = vpop.trf.xlu0
    %v487 = vpop.trf.xlu0
    %v488 = vpop.trf.xlu0
    %v489 = vpop.trf.xlu0
    %v490 = vpop.trf.xlu0
    %vm491 = vcmask 130048
    %v493 = vsel %vm491, %v475, 0
    %v496 = vsel %vm491, %v476, 0
    %v499 = vsel %vm491, %v477, 0
    %v502 = vsel %vm491, %v478, 0
    %v505 = vsel %vm491, %v479, 0
    %v508 = vsel %vm491, %v480, 0
    %v511 = vsel %vm491, %v481, 0
    %v514 = vsel %vm491, %v482, 0
    %516 = vmatprep.subr.mxu0 0.0
    %517 = vmatpush1.msra.mxu0 %v118
    %518 = vmatprep.subr.mxu0 0.0
    %519 = vmatpush1.msra.mxu0 %v119
    %520 = vmatprep.subr.mxu0 0.0
    %521 = vmatpush1.msra.mxu0 0.0
    %522 = vmatprep.subr.mxu0 0.0
    %523 = vmatpush1.msra.mxu0 0.0
    %524 = vmatprep.subr.mxu0 0.0
    %525 = vmatpush1.msra.mxu0 0.0
    %526 = vmatprep.subr.mxu0 0.0
    %527 = vmatpush1.msra.mxu0 0.0
    %528 = vmatprep.subr.mxu0 0.0
    %529 = vmatpush1.msra.mxu0 0.0
    %530 = vmatprep.subr.mxu0 0.0
    %531 = vmatpush1.msra.mxu0 0.0
    %532 = vmatprep.subr.mxu0 0.0
    %533 = vmatpush1.msra.mxu0 0.0
    %534 = vmatprep.subr.mxu0 0.0
    %535 = vmatpush1.msra.mxu0 0.0
    %536 = vmatprep.subr.mxu0 0.0
    %537 = vmatpush1.msra.mxu0 0.0
    %538 = vmatprep.subr.mxu0 0.0
    %539 = vmatpush1.msra.mxu0 0.0
    %540 = vmatprep.subr.mxu0 0.0
    %541 = vmatpush1.msra.mxu0 0.0
    %542 = vmatprep.subr.mxu0 0.0
    %543 = vmatpush1.msra.mxu0 0.0
    %544 = vmatprep.subr.mxu0 0.0
    %545 = vmatpush1.msra.mxu0 0.0
    %546 = vmatprep.subr.mxu0 0.0
    %547 = vmatpush1.msra.mxu0 0.0
    %548 = vmatprep.subr.mxu0 0.0
    %549 = vmatpush1.msra.mxu0 0.0
    %550 = vmatprep.subr.mxu0 0.0
    %551 = vmatpush1.msra.mxu0 0.0
    %552 = vmatprep.subr.mxu0 0.0
    %553 = vmatpush1.msra.mxu0 0.0
    %554 = vmatprep.subr.mxu0 0.0
    %555 = vmatpush1.msra.mxu0 0.0
    %556 = vmatprep.subr.mxu0 0.0
    %557 = vmatpush1.msra.mxu0 0.0
    %558 = vmatprep.subr.mxu0 0.0
    %559 = vmatpush1.msra.mxu0 0.0
    %560 = vmatprep.subr.mxu0 0.0
    %561 = vmatpush1.msra.mxu0 0.0
    %562 = vmatprep.subr.mxu0 0.0
    %563 = vmatpush1.msra.mxu0 0.0
    %564 = vmatprep.subr.mxu0 0.0
    %565 = vmatpush1.msra.mxu0 0.0
    %566 = vmatprep.subr.mxu0 0.0
    %567 = vmatpush1.msra.mxu0 0.0
    %568 = vmatprep.subr.mxu0 0.0
    %569 = vmatpush1.msra.mxu0 0.0
    %570 = vmatprep.subr.mxu0 0.0
    %571 = vmatpush1.msra.mxu0 0.0
    %572 = vmatprep.subr.mxu0 0.0
    %573 = vmatpush1.msra.mxu0 0.0
    %574 = vmatprep.subr.mxu0 0.0
    %575 = vmatpush1.msra.mxu0 0.0
    %576 = vmatprep.subr.mxu0 0.0
    %577 = vmatpush1.msra.mxu0 0.0
    %578 = vmatprep.subr.mxu0 0.0
    %579 = vmatpush1.msra.mxu0 0.0
    %580 = vmatprep.mubr.f32.mxu0 0.0
    %581 = vmatmul.mubr.f32.gmra.mrb[0].mxu0 %v493
    %v582 = vpop.f32.mrb[0].mxu0
    %v583 = vadd.f32 0.0, %v582
    %v584 = vpop.f32.mrb[0].mxu0
    %585 = vmatprep.mubr.f32.mxu0 0.0
    %586 = vmatmul.mubr.f32.gmra.mrb[0].mxu0 %v496
    %v587 = vpop.f32.mrb[0].mxu0
    %v588 = vadd.f32 0.0, %v587
    %v589 = vpop.f32.mrb[0].mxu0
    %590 = vmatprep.mubr.f32.mxu0 0.0
    %591 = vmatmul.mubr.f32.gmra.mrb[0].mxu0 %v499
    %v592 = vpop.f32.mrb[0].mxu0
    %v593 = vadd.f32 0.0, %v592
    %v594 = vpop.f32.mrb[0].mxu0
    %595 = vmatprep.mubr.f32.mxu0 0.0
    %596 = vmatmul.mubr.f32.gmra.mrb[0].mxu0 %v502
    %v597 = vpop.f32.mrb[0].mxu0
    %v598 = vadd.f32 0.0, %v597
    %v599 = vpop.f32.mrb[0].mxu0
    %600 = vmatprep.mubr.f32.mxu0 0.0
    %601 = vmatmul.mubr.f32.gmra.mrb[0].mxu0 %v505
    %v602 = vpop.f32.mrb[0].mxu0
    %v603 = vadd.f32 0.0, %v602
    %v604 = vpop.f32.mrb[0].mxu0
    %605 = vmatprep.mubr.f32.mxu0 0.0
    %606 = vmatmul.mubr.f32.gmra.mrb[0].mxu0 %v508
    %v607 = vpop.f32.mrb[0].mxu0
    %v608 = vadd.f32 0.0, %v607
    %v609 = vpop.f32.mrb[0].mxu0
    %610 = vmatprep.mubr.f32.mxu0 0.0
    %611 = vmatmul.mubr.f32.gmra.mrb[0].mxu0 %v511
    %v612 = vpop.f32.mrb[0].mxu0
    %v613 = vadd.f32 0.0, %v612
    %v614 = vpop.f32.mrb[0].mxu0
    %615 = vmatprep.mubr.f32.mxu0 0.0
    %616 = vmatmul.mubr.f32.gmra.mrb[0].mxu0 %v514
    %v617 = vpop.f32.mrb[0].mxu0
    %v618 = vadd.f32 0.0, %v617
    %v619 = vpop.f32.mrb[0].mxu0
    %620 = vdwg.mxu0
    %v621 = vmul.f32 %v583, %v110
    %v622 = vmul.f32 %v588, %v111
    %v623 = vmul.f32 %v593, %v112
    %v624 = vmul.f32 %v598, %v113
    %v625 = vmul.f32 %v603, %v114
    %v626 = vmul.f32 %v608, %v115
    %v627 = vmul.f32 %v613, %v116
    %v628 = vmul.f32 %v618, %v117
    %629 = vxpose.xlu0.b32.start [1/16] %v118, 128
    %630 = vxpose.xlu0.b32.cont [2/16] %v119, 128
    %631 = vxpose.xlu0.b32.cont [3/16] 0.0, 128
    %632 = vxpose.xlu0.b32.cont [4/16] 0.0, 128
    %633 = vxpose.xlu0.b32.cont [5/16] 0.0, 128
    %634 = vxpose.xlu0.b32.cont [6/16] 0.0, 128
    %635 = vxpose.xlu0.b32.cont [7/16] 0.0, 128
    %636 = vxpose.xlu0.b32.cont [8/16] 0.0, 128
    %637 = vxpose.xlu0.b32.cont [9/16] 0.0, 128
    %638 = vxpose.xlu0.b32.cont [10/16] 0.0, 128
    %639 = vxpose.xlu0.b32.cont [11/16] 0.0, 128
    %640 = vxpose.xlu0.b32.cont [12/16] 0.0, 128
    %641 = vxpose.xlu0.b32.cont [13/16] 0.0, 128
    %642 = vxpose.xlu0.b32.cont [14/16] 0.0, 128
    %643 = vxpose.xlu0.b32.cont [15/16] 0.0, 128
    %644 = vxpose.xlu0.b32.end [16/16] 0.0, 128
    %v645 = vpop.trf.xlu0
    %v646 = vpop.trf.xlu0
    %v647 = vpop.trf.xlu0
    %v648 = vpop.trf.xlu0
    %v649 = vpop.trf.xlu0
    %v650 = vpop.trf.xlu0
    %v651 = vpop.trf.xlu0
    %v652 = vpop.trf.xlu0
    %v653 = vpop.trf.xlu0
    %v654 = vpop.trf.xlu0
    %v655 = vpop.trf.xlu0
    %v656 = vpop.trf.xlu0
    %v657 = vpop.trf.xlu0
    %v658 = vpop.trf.xlu0
    %v659 = vpop.trf.xlu0
    %v660 = vpop.trf.xlu0
    %v662 = vsel %vm491, %v645, 0
    %v665 = vsel %vm491, %v646, 0
    %v668 = vsel %vm491, %v647, 0
    %v671 = vsel %vm491, %v648, 0
    %v674 = vsel %vm491, %v649, 0
    %v677 = vsel %vm491, %v650, 0
    %v680 = vsel %vm491, %v651, 0
    %v683 = vsel %vm491, %v652, 0
    %v686 = vsel %vm491, %v653, 0
    %v689 = vsel %vm491, %v654, 0
    %v692 = vsel %vm491, %v655, 0
    %v695 = vsel %vm491, %v656, 0
    %v698 = vsel %vm491, %v657, 0
    %v701 = vsel %vm491, %v658, 0
    %v704 = vsel %vm491, %v659, 0
    %v707 = vsel %vm491, %v660, 0
    %709 = vmatprep.subr.mxu0 0.0
    %710 = vmatpush1.msra.mxu0 %v441
    %711 = vmatprep.subr.mxu0 0.0
    %712 = vmatpush1.msra.mxu0 %v446
    %713 = vmatprep.subr.mxu0 0.0
    %714 = vmatpush1.msra.mxu0 0.0
    %715 = vmatprep.subr.mxu0 0.0
    %716 = vmatpush1.msra.mxu0 0.0
    %717 = vmatprep.subr.mxu0 0.0
    %718 = vmatpush1.msra.mxu0 0.0
    %719 = vmatprep.subr.mxu0 0.0
    %720 = vmatpush1.msra.mxu0 0.0
    %721 = vmatprep.subr.mxu0 0.0
    %722 = vmatpush1.msra.mxu0 0.0
    %723 = vmatprep.subr.mxu0 0.0
    %724 = vmatpush1.msra.mxu0 0.0
    %725 = vmatprep.subr.mxu0 0.0
    %726 = vmatpush1.msra.mxu0 0.0
    %727 = vmatprep.subr.mxu0 0.0
    %728 = vmatpush1.msra.mxu0 0.0
    %729 = vmatprep.subr.mxu0 0.0
    %730 = vmatpush1.msra.mxu0 0.0
    %731 = vmatprep.subr.mxu0 0.0
    %732 = vmatpush1.msra.mxu0 0.0
    %733 = vmatprep.subr.mxu0 0.0
    %734 = vmatpush1.msra.mxu0 0.0
    %735 = vmatprep.subr.mxu0 0.0
    %736 = vmatpush1.msra.mxu0 0.0
    %737 = vmatprep.subr.mxu0 0.0
    %738 = vmatpush1.msra.mxu0 0.0
    %739 = vmatprep.subr.mxu0 0.0
    %740 = vmatpush1.msra.mxu0 0.0
    %741 = vmatprep.subr.mxu0 0.0
    %742 = vmatpush1.msra.mxu0 0.0
    %743 = vmatprep.subr.mxu0 0.0
    %744 = vmatpush1.msra.mxu0 0.0
    %745 = vmatprep.subr.mxu0 0.0
    %746 = vmatpush1.msra.mxu0 0.0
    %747 = vmatprep.subr.mxu0 0.0
    %748 = vmatpush1.msra.mxu0 0.0
    %749 = vmatprep.subr.mxu0 0.0
    %750 = vmatpush1.msra.mxu0 0.0
    %751 = vmatprep.subr.mxu0 0.0
    %752 = vmatpush1.msra.mxu0 0.0
    %753 = vmatprep.subr.mxu0 0.0
    %754 = vmatpush1.msra.mxu0 0.0
    %755 = vmatprep.subr.mxu0 0.0
    %756 = vmatpush1.msra.mxu0 0.0
    %757 = vmatprep.subr.mxu0 0.0
    %758 = vmatpush1.msra.mxu0 0.0
    %759 = vmatprep.subr.mxu0 0.0
    %760 = vmatpush1.msra.mxu0 0.0
    %761 = vmatprep.subr.mxu0 0.0
    %762 = vmatpush1.msra.mxu0 0.0
    %763 = vmatprep.subr.mxu0 0.0
    %764 = vmatpush1.msra.mxu0 0.0
    %765 = vmatprep.subr.mxu0 0.0
    %766 = vmatpush1.msra.mxu0 0.0
    %767 = vmatprep.subr.mxu0 0.0
    %768 = vmatpush1.msra.mxu0 0.0
    %769 = vmatprep.subr.mxu0 0.0
    %770 = vmatpush1.msra.mxu0 0.0
    %771 = vmatprep.subr.mxu0 0.0
    %772 = vmatpush1.msra.mxu0 0.0
    %773 = vmatprep.mubr.f32.mxu0 0.0
    %774 = vmatmul.mubr.f32.gmra.mrb[0].mxu0 %v662
    %v775 = vpop.f32.mrb[0].mxu0
    %v776 = vadd.f32 0.0, %v775
    %v777 = vpop.f32.mrb[0].mxu0
    %778 = vmatprep.mubr.f32.mxu0 0.0
    %779 = vmatmul.mubr.f32.gmra.mrb[0].mxu0 %v665
    %v780 = vpop.f32.mrb[0].mxu0
    %v781 = vadd.f32 0.0, %v780
    %v782 = vpop.f32.mrb[0].mxu0
    %783 = vmatprep.mubr.f32.mxu0 0.0
    %784 = vmatmul.mubr.f32.gmra.mrb[0].mxu0 %v668
    %v785 = vpop.f32.mrb[0].mxu0
    %v786 = vadd.f32 0.0, %v785
    %v787 = vpop.f32.mrb[0].mxu0
    %788 = vmatprep.mubr.f32.mxu0 0.0
    %789 = vmatmul.mubr.f32.gmra.mrb[0].mxu0 %v671
    %v790 = vpop.f32.mrb[0].mxu0
    %v791 = vadd.f32 0.0, %v790
    %v792 = vpop.f32.mrb[0].mxu0
    %793 = vmatprep.mubr.f32.mxu0 0.0
    %794 = vmatmul.mubr.f32.gmra.mrb[0].mxu0 %v674
    %v795 = vpop.f32.mrb[0].mxu0
    %v796 = vadd.f32 0.0, %v795
    %v797 = vpop.f32.mrb[0].mxu0
    %798 = vmatprep.mubr.f32.mxu0 0.0
    %799 = vmatmul.mubr.f32.gmra.mrb[0].mxu0 %v677
    %v800 = vpop.f32.mrb[0].mxu0
    %v801 = vadd.f32 0.0, %v800
    %v802 = vpop.f32.mrb[0].mxu0
    %803 = vmatprep.mubr.f32.mxu0 0.0
    %804 = vmatmul.mubr.f32.gmra.mrb[0].mxu0 %v680
    %v805 = vpop.f32.mrb[0].mxu0
    %v806 = vadd.f32 0.0, %v805
    %v807 = vpop.f32.mrb[0].mxu0
    %808 = vmatprep.mubr.f32.mxu0 0.0
    %809 = vmatmul.mubr.f32.gmra.mrb[0].mxu0 %v683
    %v810 = vpop.f32.mrb[0].mxu0
    %v811 = vadd.f32 0.0, %v810
    %v812 = vpop.f32.mrb[0].mxu0
    %813 = vmatprep.mubr.f32.mxu0 0.0
    %814 = vmatmul.mubr.f32.gmra.mrb[0].mxu0 %v686
    %v815 = vpop.f32.mrb[0].mxu0
    %v816 = vadd.f32 0.0, %v815
    %v817 = vpop.f32.mrb[0].mxu0
    %818 = vmatprep.mubr.f32.mxu0 0.0
    %819 = vmatmul.mubr.f32.gmra.mrb[0].mxu0 %v689
    %v820 = vpop.f32.mrb[0].mxu0
    %v821 = vadd.f32 0.0, %v820
    %v822 = vpop.f32.mrb[0].mxu0
    %823 = vmatprep.mubr.f32.mxu0 0.0
    %824 = vmatmul.mubr.f32.gmra.mrb[0].mxu0 %v692
    %v825 = vpop.f32.mrb[0].mxu0
    %v826 = vadd.f32 0.0, %v825
    %v827 = vpop.f32.mrb[0].mxu0
    %828 = vmatprep.mubr.f32.mxu0 0.0
    %829 = vmatmul.mubr.f32.gmra.mrb[0].mxu0 %v695
    %v830 = vpop.f32.mrb[0].mxu0
    %v831 = vadd.f32 0.0, %v830
    %v832 = vpop.f32.mrb[0].mxu0
    %833 = vmatprep.mubr.f32.mxu0 0.0
    %834 = vmatmul.mubr.f32.gmra.mrb[0].mxu0 %v698
    %v835 = vpop.f32.mrb[0].mxu0
    %v836 = vadd.f32 0.0, %v835
    %v837 = vpop.f32.mrb[0].mxu0
    %838 = vmatprep.mubr.f32.mxu0 0.0
    %839 = vmatmul.mubr.f32.gmra.mrb[0].mxu0 %v701
    %v840 = vpop.f32.mrb[0].mxu0
    %v841 = vadd.f32 0.0, %v840
    %v842 = vpop.f32.mrb[0].mxu0
    %843 = vmatprep.mubr.f32.mxu0 0.0
    %844 = vmatmul.mubr.f32.gmra.mrb[0].mxu0 %v704
    %v845 = vpop.f32.mrb[0].mxu0
    %v846 = vadd.f32 0.0, %v845
    %v847 = vpop.f32.mrb[0].mxu0
    %848 = vmatprep.mubr.f32.mxu0 0.0
    %849 = vmatmul.mubr.f32.gmra.mrb[0].mxu0 %v707
    %v850 = vpop.f32.mrb[0].mxu0
    %v851 = vadd.f32 0.0, %v850
    %v852 = vpop.f32.mrb[0].mxu0
    %853 = vdwg.mxu0
    %v854 = vmul.f32 %v776, %v70
    %v855 = vmul.f32 %v781, %v71
    %v856 = vmul.f32 %v786, %v72
    %v857 = vmul.f32 %v791, %v73
    %v858 = vmul.f32 %v796, %v74
    %v859 = vmul.f32 %v801, %v75
    %v860 = vmul.f32 %v806, %v76
    %v861 = vmul.f32 %v811, %v77
    %v862 = vmul.f32 %v816, %v78
    %v863 = vmul.f32 %v821, %v79
    %v864 = vmul.f32 %v826, %v80
    %v865 = vmul.f32 %v831, %v81
    %v866 = vmul.f32 %v836, %v82
    %v867 = vmul.f32 %v841, %v83
    %v868 = vmul.f32 %v846, %v84
    %v869 = vmul.f32 %v851, %v85
    %v871 = vsel %vm126, %v263, 0
    %v874 = vsel %vm126, %v268, 0
    %876 = vmatprep.subr.mxu0 0.0
    %877 = vmatpush1.msra.mxu0 %v621
    %878 = vmatprep.subr.mxu0 0.0
    %879 = vmatpush1.msra.mxu0 %v622
    %880 = vmatprep.subr.mxu0 0.0
    %881 = vmatpush1.msra.mxu0 %v623
    %882 = vmatprep.subr.mxu0 0.0
    %883 = vmatpush1.msra.mxu0 %v624
    %884 = vmatprep.subr.mxu0 0.0
    %885 = vmatpush1.msra.mxu0 %v625
    %886 = vmatprep.subr.mxu0 0.0
    %887 = vmatpush1.msra.mxu0 %v626
    %888 = vmatprep.subr.mxu0 0.0
    %889 = vmatpush1.msra.mxu0 %v627
    %890 = vmatprep.subr.mxu0 0.0
    %891 = vmatpush1.msra.mxu0 %v628
    %892 = vmatprep.subr.mxu0 0.0
    %893 = vmatpush1.msra.mxu0 0.0
    %894 = vmatprep.subr.mxu0 0.0
    %895 = vmatpush1.msra.mxu0 0.0
    %896 = vmatprep.subr.mxu0 0.0
    %897 = vmatpush1.msra.mxu0 0.0
    %898 = vmatprep.subr.mxu0 0.0
    %899 = vmatpush1.msra.mxu0 0.0
    %900 = vmatprep.subr.mxu0 0.0
    %901 = vmatpush1.msra.mxu0 0.0
    %902 = vmatprep.subr.mxu0 0.0
    %903 = vmatpush1.msra.mxu0 0.0
    %904 = vmatprep.subr.mxu0 0.0
    %905 = vmatpush1.msra.mxu0 0.0
    %906 = vmatprep.subr.mxu0 0.0
    %907 = vmatpush1.msra.mxu0 0.0
    %908 = vmatprep.subr.mxu0 0.0
    %909 = vmatpush1.msra.mxu0 0.0
    %910 = vmatprep.subr.mxu0 0.0
    %911 = vmatpush1.msra.mxu0 0.0
    %912 = vmatprep.subr.mxu0 0.0
    %913 = vmatpush1.msra.mxu0 0.0
    %914 = vmatprep.subr.mxu0 0.0
    %915 = vmatpush1.msra.mxu0 0.0
    %916 = vmatprep.subr.mxu0 0.0
    %917 = vmatpush1.msra.mxu0 0.0
    %918 = vmatprep.subr.mxu0 0.0
    %919 = vmatpush1.msra.mxu0 0.0
    %920 = vmatprep.subr.mxu0 0.0
    %921 = vmatpush1.msra.mxu0 0.0
    %922 = vmatprep.subr.mxu0 0.0
    %923 = vmatpush1.msra.mxu0 0.0
    %924 = vmatprep.subr.mxu0 0.0
    %925 = vmatpush1.msra.mxu0 0.0
    %926 = vmatprep.subr.mxu0 0.0
    %927 = vmatpush1.msra.mxu0 0.0
    %928 = vmatprep.subr.mxu0 0.0
    %929 = vmatpush1.msra.mxu0 0.0
    %930 = vmatprep.subr.mxu0 0.0
    %931 = vmatpush1.msra.mxu0 0.0
    %932 = vmatprep.subr.mxu0 0.0
    %933 = vmatpush1.msra.mxu0 0.0
    %934 = vmatprep.subr.mxu0 0.0
    %935 = vmatpush1.msra.mxu0 0.0
    %936 = vmatprep.subr.mxu0 0.0
    %937 = vmatpush1.msra.mxu0 0.0
    %938 = vmatprep.subr.mxu0 0.0
    %939 = vmatpush1.msra.mxu0 0.0
    %940 = vmatprep.mubr.f32.mxu0 0.0
    %941 = vmatmul.mubr.f32.gmra.mrb[0].mxu0 %v871
    %v942 = vpop.f32.mrb[0].mxu0
    %v943 = vadd.f32 0.0, %v942
    %v944 = vpop.f32.mrb[0].mxu0
    %945 = vmatprep.mubr.f32.mxu0 0.0
    %946 = vmatmul.mubr.f32.gmra.mrb[0].mxu0 %v874
    %v947 = vpop.f32.mrb[0].mxu0
    %v948 = vadd.f32 0.0, %v947
    %v949 = vpop.f32.mrb[0].mxu0
    %950 = vdwg.mxu0
    %951 = vmax.xlane.f32.xlu0 %v943
    %v952 = vpop.xlane.xlu0 %951
    %953 = vmax.xlane.f32.xlu0 %v948
    %v954 = vpop.xlane.xlu0 %953
    %v955 = vsub.f32 %v943, %v952
    %v956 = vsub.f32 %v948, %v954
    %v957 = vmul.f32 %v955, 1.442695
    %v958 = vpow.pop %v957
    %v959 = vmul.f32 %v956, 1.442695
    %v960 = vpow.pop %v959
    %961 = vmatprep.subr.mxu0 0.0
    %962 = vmatpush1.msra.mxu0 %v94
    %963 = vmatprep.subr.mxu0 0.0
    %964 = vmatpush1.msra.mxu0 %v95
    %965 = vmatprep.subr.mxu0 0.0
    %966 = vmatpush1.msra.mxu0 %v96
    %967 = vmatprep.subr.mxu0 0.0
    %968 = vmatpush1.msra.mxu0 %v97
    %969 = vmatprep.subr.mxu0 0.0
    %970 = vmatpush1.msra.mxu0 %v98
    %971 = vmatprep.subr.mxu0 0.0
    %972 = vmatpush1.msra.mxu0 %v99
    %973 = vmatprep.subr.mxu0 0.0
    %974 = vmatpush1.msra.mxu0 %v100
    %975 = vmatprep.subr.mxu0 0.0
    %976 = vmatpush1.msra.mxu0 %v101
    %977 = vmatprep.subr.mxu0 0.0
    %978 = vmatpush1.msra.mxu0 %v102
    %979 = vmatprep.subr.mxu0 0.0
    %980 = vmatpush1.msra.mxu0 %v103
    %981 = vmatprep.subr.mxu0 0.0
    %982 = vmatpush1.msra.mxu0 %v104
    %983 = vmatprep.subr.mxu0 0.0
    %984 = vmatpush1.msra.mxu0 %v105
    %985 = vmatprep.subr.mxu0 0.0
    %986 = vmatpush1.msra.mxu0 %v106
    %987 = vmatprep.subr.mxu0 0.0
    %988 = vmatpush1.msra.mxu0 %v107
    %989 = vmatprep.subr.mxu0 0.0
    %990 = vmatpush1.msra.mxu0 %v108
    %991 = vmatprep.subr.mxu0 0.0
    %992 = vmatpush1.msra.mxu0 %v109
    %993 = vmatprep.subr.mxu0 0.0
    %994 = vmatpush1.msra.mxu0 0.0
    %995 = vmatprep.subr.mxu0 0.0
    %996 = vmatpush1.msra.mxu0 0.0
    %997 = vmatprep.subr.mxu0 0.0
    %998 = vmatpush1.msra.mxu0 0.0
    %999 = vmatprep.subr.mxu0 0.0
    %1000 = vmatpush1.msra.mxu0 0.0
    %1001 = vmatprep.subr.mxu0 0.0
    %1002 = vmatpush1.msra.mxu0 0.0
    %1003 = vmatprep.subr.mxu0 0.0
    %1004 = vmatpush1.msra.mxu0 0.0
    %1005 = vmatprep.subr.mxu0 0.0
    %1006 = vmatpush1.msra.mxu0 0.0
    %1007 = vmatprep.subr.mxu0 0.0
    %1008 = vmatpush1.msra.mxu0 0.0
    %1009 = vmatprep.subr.mxu0 0.0
    %1010 = vmatpush1.msra.mxu0 0.0
    %1011 = vmatprep.subr.mxu0 0.0
    %1012 = vmatpush1.msra.mxu0 0.0
    %1013 = vmatprep.subr.mxu0 0.0
    %1014 = vmatpush1.msra.mxu0 0.0
    %1015 = vmatprep.subr.mxu0 0.0
    %1016 = vmatpush1.msra.mxu0 0.0
    %1017 = vmatprep.subr.mxu0 0.0
    %1018 = vmatpush1.msra.mxu0 0.0
    %1019 = vmatprep.subr.mxu0 0.0
    %1020 = vmatpush1.msra.mxu0 0.0
    %1021 = vmatprep.subr.mxu0 0.0
    %1022 = vmatpush1.msra.mxu0 0.0
    %1023 = vmatprep.subr.mxu0 0.0
    %1024 = vmatpush1.msra.mxu0 0.0
    %1025 = vmatprep.mubr.f32.mxu0 0.0
    %1026 = vmatmul.mubr.f32.gmra.mrb[0].mxu0 %v958
    %v1027 = vpop.f32.mrb[0].mxu0
    %v1028 = vadd.f32 0.0, %v1027
    %v1029 = vpop.f32.mrb[0].mxu0
    %1030 = vmatprep.mubr.f32.mxu0 0.0
    %1031 = vmatmul.mubr.f32.gmra.mrb[0].mxu0 %v960
    %v1032 = vpop.f32.mrb[0].mxu0
    %v1033 = vadd.f32 0.0, %v1032
    %v1034 = vpop.f32.mrb[0].mxu0
    %1035 = vdwg.mxu0
    %v1036 = vrcp.pop %v1028
    %v1037 = vmul.f32 %v958, %v1036
    %v1038 = vrcp.pop %v1033
    %v1039 = vmul.f32 %v960, %v1038
    %1040 = vmatprep.subr.mxu0 0.0
    %1041 = vmatpush1.msra.mxu0 %v854
    %1042 = vmatprep.subr.mxu0 0.0
    %1043 = vmatpush1.msra.mxu0 %v855
    %1044 = vmatprep.subr.mxu0 0.0
    %1045 = vmatpush1.msra.mxu0 %v856
    %1046 = vmatprep.subr.mxu0 0.0
    %1047 = vmatpush1.msra.mxu0 %v857
    %1048 = vmatprep.subr.mxu0 0.0
    %1049 = vmatpush1.msra.mxu0 %v858
    %1050 = vmatprep.subr.mxu0 0.0
    %1051 = vmatpush1.msra.mxu0 %v859
    %1052 = vmatprep.subr.mxu0 0.0
    %1053 = vmatpush1.msra.mxu0 %v860
    %1054 = vmatprep.subr.mxu0 0.0
    %1055 = vmatpush1.msra.mxu0 %v861
    %1056 = vmatprep.subr.mxu0 0.0
    %1057 = vmatpush1.msra.mxu0 %v862
    %1058 = vmatprep.subr.mxu0 0.0
    %1059 = vmatpush1.msra.mxu0 %v863
    %1060 = vmatprep.subr.mxu0 0.0
    %1061 = vmatpush1.msra.mxu0 %v864
    %1062 = vmatprep.subr.mxu0 0.0
    %1063 = vmatpush1.msra.mxu0 %v865
    %1064 = vmatprep.subr.mxu0 0.0
    %1065 = vmatpush1.msra.mxu0 %v866
    %1066 = vmatprep.subr.mxu0 0.0
    %1067 = vmatpush1.msra.mxu0 %v867
    %1068 = vmatprep.subr.mxu0 0.0
    %1069 = vmatpush1.msra.mxu0 %v868
    %1070 = vmatprep.subr.mxu0 0.0
    %1071 = vmatpush1.msra.mxu0 %v869
    %1072 = vmatprep.subr.mxu0 0.0
    %1073 = vmatpush1.msra.mxu0 0.0
    %1074 = vmatprep.subr.mxu0 0.0
    %1075 = vmatpush1.msra.mxu0 0.0
    %1076 = vmatprep.subr.mxu0 0.0
    %1077 = vmatpush1.msra.mxu0 0.0
    %1078 = vmatprep.subr.mxu0 0.0
    %1079 = vmatpush1.msra.mxu0 0.0
    %1080 = vmatprep.subr.mxu0 0.0
    %1081 = vmatpush1.msra.mxu0 0.0
    %1082 = vmatprep.subr.mxu0 0.0
    %1083 = vmatpush1.msra.mxu0 0.0
    %1084 = vmatprep.subr.mxu0 0.0
    %1085 = vmatpush1.msra.mxu0 0.0
    %1086 = vmatprep.subr.mxu0 0.0
    %1087 = vmatpush1.msra.mxu0 0.0
    %1088 = vmatprep.subr.mxu0 0.0
    %1089 = vmatpush1.msra.mxu0 0.0
    %1090 = vmatprep.subr.mxu0 0.0
    %1091 = vmatpush1.msra.mxu0 0.0
    %1092 = vmatprep.subr.mxu0 0.0
    %1093 = vmatpush1.msra.mxu0 0.0
    %1094 = vmatprep.subr.mxu0 0.0
    %1095 = vmatpush1.msra.mxu0 0.0
    %1096 = vmatprep.subr.mxu0 0.0
    %1097 = vmatpush1.msra.mxu0 0.0
    %1098 = vmatprep.subr.mxu0 0.0
    %1099 = vmatpush1.msra.mxu0 0.0
    %1100 = vmatprep.subr.mxu0 0.0
    %1101 = vmatpush1.msra.mxu0 0.0
    %1102 = vmatprep.subr.mxu0 0.0
    %1103 = vmatpush1.msra.mxu0 0.0
    %1104 = vmatprep.mubr.f32.mxu0 0.0
    %1105 = vmatmul.mubr.f32.gmra.mrb[0].mxu0 %v1037
    %v1106 = vpop.f32.mrb[0].mxu0
    %v1107 = vadd.f32 0.0, %v1106
    %v1108 = vpop.f32.mrb[0].mxu0
    %1109 = vmatprep.mubr.f32.mxu0 0.0
    %1110 = vmatmul.mubr.f32.gmra.mrb[0].mxu0 %v1039
    %v1111 = vpop.f32.mrb[0].mxu0
    %v1112 = vadd.f32 0.0, %v1111
    %v1113 = vpop.f32.mrb[0].mxu0
    %1114 = vdwg.mxu0
    %1115 = vxpose.xlu0.b32.start [1/16] %v362, 128
    %1116 = vxpose.xlu0.b32.cont [2/16] %v367, 128
    %1117 = vxpose.xlu0.b32.cont [3/16] 0.0, 128
    %1118 = vxpose.xlu0.b32.cont [4/16] 0.0, 128
    %1119 = vxpose.xlu0.b32.cont [5/16] 0.0, 128
    %1120 = vxpose.xlu0.b32.cont [6/16] 0.0, 128
    %1121 = vxpose.xlu0.b32.cont [7/16] 0.0, 128
    %1122 = vxpose.xlu0.b32.cont [8/16] 0.0, 128
    %1123 = vxpose.xlu0.b32.cont [9/16] 0.0, 128
    %1124 = vxpose.xlu0.b32.cont [10/16] 0.0, 128
    %1125 = vxpose.xlu0.b32.cont [11/16] 0.0, 128
    %1126 = vxpose.xlu0.b32.cont [12/16] 0.0, 128
    %1127 = vxpose.xlu0.b32.cont [13/16] 0.0, 128
    %1128 = vxpose.xlu0.b32.cont [14/16] 0.0, 128
    %1129 = vxpose.xlu0.b32.cont [15/16] 0.0, 128
    %1130 = vxpose.xlu0.b32.end [16/16] 0.0, 128
    %v1131 = vpop.trf.xlu0
    %v1132 = vpop.trf.xlu0
    %v1133 = vpop.trf.xlu0
    %v1134 = vpop.trf.xlu0
    %v1135 = vpop.trf.xlu0
    %v1136 = vpop.trf.xlu0
    %v1137 = vpop.trf.xlu0
    %v1138 = vpop.trf.xlu0
    %v1139 = vpop.trf.xlu0
    %v1140 = vpop.trf.xlu0
    %v1141 = vpop.trf.xlu0
    %v1142 = vpop.trf.xlu0
    %v1143 = vpop.trf.xlu0
    %v1144 = vpop.trf.xlu0
    %v1145 = vpop.trf.xlu0
    %v1146 = vpop.trf.xlu0
    %v1148 = vsel %vm491, %v1131, 0
    %v1151 = vsel %vm491, %v1132, 0
    %v1154 = vsel %vm491, %v1133, 0
    %v1157 = vsel %vm491, %v1134, 0
    %v1160 = vsel %vm491, %v1135, 0
    %v1163 = vsel %vm491, %v1136, 0
    %v1166 = vsel %vm491, %v1137, 0
    %v1169 = vsel %vm491, %v1138, 0
    %1171 = vmatprep.subr.mxu0 0.0
    %1172 = vmatpush1.msra.mxu0 %v118
    %1173 = vmatprep.subr.mxu0 0.0
    %1174 = vmatpush1.msra.mxu0 %v119
    %1175 = vmatprep.subr.mxu0 0.0
    %1176 = vmatpush1.msra.mxu0 0.0
    %1177 = vmatprep.subr.mxu0 0.0
    %1178 = vmatpush1.msra.mxu0 0.0
    %1179 = vmatprep.subr.mxu0 0.0
    %1180 = vmatpush1.msra.mxu0 0.0
    %1181 = vmatprep.subr.mxu0 0.0
    %1182 = vmatpush1.msra.mxu0 0.0
    %1183 = vmatprep.subr.mxu0 0.0
    %1184 = vmatpush1.msra.mxu0 0.0
    %1185 = vmatprep.subr.mxu0 0.0
    %1186 = vmatpush1.msra.mxu0 0.0
    %1187 = vmatprep.subr.mxu0 0.0
    %1188 = vmatpush1.msra.mxu0 0.0
    %1189 = vmatprep.subr.mxu0 0.0
    %1190 = vmatpush1.msra.mxu0 0.0
    %1191 = vmatprep.subr.mxu0 0.0
    %1192 = vmatpush1.msra.mxu0 0.0
    %1193 = vmatprep.subr.mxu0 0.0
    %1194 = vmatpush1.msra.mxu0 0.0
    %1195 = vmatprep.subr.mxu0 0.0
    %1196 = vmatpush1.msra.mxu0 0.0
    %1197 = vmatprep.subr.mxu0 0.0
    %1198 = vmatpush1.msra.mxu0 0.0
    %1199 = vmatprep.subr.mxu0 0.0
    %1200 = vmatpush1.msra.mxu0 0.0
    %1201 = vmatprep.subr.mxu0 0.0
    %1202 = vmatpush1.msra.mxu0 0.0
    %1203 = vmatprep.subr.mxu0 0.0
    %1204 = vmatpush1.msra.mxu0 0.0
    %1205 = vmatprep.subr.mxu0 0.0
    %1206 = vmatpush1.msra.mxu0 0.0
    %1207 = vmatprep.subr.mxu0 0.0
    %1208 = vmatpush1.msra.mxu0 0.0
    %1209 = vmatprep.subr.mxu0 0.0
    %1210 = vmatpush1.msra.mxu0 0.0
    %1211 = vmatprep.subr.mxu0 0.0
    %1212 = vmatpush1.msra.mxu0 0.0
    %1213 = vmatprep.subr.mxu0 0.0
    %1214 = vmatpush1.msra.mxu0 0.0
    %1215 = vmatprep.subr.mxu0 0.0
    %1216 = vmatpush1.msra.mxu0 0.0
    %1217 = vmatprep.subr.mxu0 0.0
    %1218 = vmatpush1.msra.mxu0 0.0
    %1219 = vmatprep.subr.mxu0 0.0
    %1220 = vmatpush1.msra.mxu0 0.0
    %1221 = vmatprep.subr.mxu0 0.0
    %1222 = vmatpush1.msra.mxu0 0.0
    %1223 = vmatprep.subr.mxu0 0.0
    %1224 = vmatpush1.msra.mxu0 0.0
    %1225 = vmatprep.subr.mxu0 0.0
    %1226 = vmatpush1.msra.mxu0 0.0
    %1227 = vmatprep.subr.mxu0 0.0
    %1228 = vmatpush1.msra.mxu0 0.0
    %1229 = vmatprep.subr.mxu0 0.0
    %1230 = vmatpush1.msra.mxu0 0.0
    %1231 = vmatprep.subr.mxu0 0.0
    %1232 = vmatpush1.msra.mxu0 0.0
    %1233 = vmatprep.subr.mxu0 0.0
    %1234 = vmatpush1.msra.mxu0 0.0
    %1235 = vmatprep.mubr.f32.mxu0 0.0
    %1236 = vmatmul.mubr.f32.gmra.mrb[0].mxu0 %v1148
    %v1237 = vpop.f32.mrb[0].mxu0
    %v1238 = vadd.f32 0.0, %v1237
    %v1239 = vpop.f32.mrb[0].mxu0
    %1240 = vmatprep.mubr.f32.mxu0 0.0
    %1241 = vmatmul.mubr.f32.gmra.mrb[0].mxu0 %v1151
    %v1242 = vpop.f32.mrb[0].mxu0
    %v1243 = vadd.f32 0.0, %v1242
    %v1244 = vpop.f32.mrb[0].mxu0
    %1245 = vmatprep.mubr.f32.mxu0 0.0
    %1246 = vmatmul.mubr.f32.gmra.mrb[0].mxu0 %v1154
    %v1247 = vpop.f32.mrb[0].mxu0
    %v1248 = vadd.f32 0.0, %v1247
    %v1249 = vpop.f32.mrb[0].mxu0
    %1250 = vmatprep.mubr.f32.mxu0 0.0
    %1251 = vmatmul.mubr.f32.gmra.mrb[0].mxu0 %v1157
    %v1252 = vpop.f32.mrb[0].mxu0
    %v1253 = vadd.f32 0.0, %v1252
    %v1254 = vpop.f32.mrb[0].mxu0
    %1255 = vmatprep.mubr.f32.mxu0 0.0
    %1256 = vmatmul.mubr.f32.gmra.mrb[0].mxu0 %v1160
    %v1257 = vpop.f32.mrb[0].mxu0
    %v1258 = vadd.f32 0.0, %v1257
    %v1259 = vpop.f32.mrb[0].mxu0
    %1260 = vmatprep.mubr.f32.mxu0 0.0
    %1261 = vmatmul.mubr.f32.gmra.mrb[0].mxu0 %v1163
    %v1262 = vpop.f32.mrb[0].mxu0
    %v1263 = vadd.f32 0.0, %v1262
    %v1264 = vpop.f32.mrb[0].mxu0
    %1265 = vmatprep.mubr.f32.mxu0 0.0
    %1266 = vmatmul.mubr.f32.gmra.mrb[0].mxu0 %v1166
    %v1267 = vpop.f32.mrb[0].mxu0
    %v1268 = vadd.f32 0.0, %v1267
    %v1269 = vpop.f32.mrb[0].mxu0
    %1270 = vmatprep.mubr.f32.mxu0 0.0
    %1271 = vmatmul.mubr.f32.gmra.mrb[0].mxu0 %v1169
    %v1272 = vpop.f32.mrb[0].mxu0
    %v1273 = vadd.f32 0.0, %v1272
    %v1274 = vpop.f32.mrb[0].mxu0
    %1275 = vdwg.mxu0
    %v1276 = vmul.f32 %v1238, %v110
    %v1277 = vmul.f32 %v1243, %v111
    %v1278 = vmul.f32 %v1248, %v112
    %v1279 = vmul.f32 %v1253, %v113
    %v1280 = vmul.f32 %v1258, %v114
    %v1281 = vmul.f32 %v1263, %v115
    %v1282 = vmul.f32 %v1268, %v116
    %v1283 = vmul.f32 %v1273, %v117
    %1284 = vmatprep.subr.mxu0 0.0
    %1285 = vmatpush1.msra.mxu0 %v451
    %1286 = vmatprep.subr.mxu0 0.0
    %1287 = vmatpush1.msra.mxu0 %v456
    %1288 = vmatprep.subr.mxu0 0.0
    %1289 = vmatpush1.msra.mxu0 0.0
    %1290 = vmatprep.subr.mxu0 0.0
    %1291 = vmatpush1.msra.mxu0 0.0
    %1292 = vmatprep.subr.mxu0 0.0
    %1293 = vmatpush1.msra.mxu0 0.0
    %1294 = vmatprep.subr.mxu0 0.0
    %1295 = vmatpush1.msra.mxu0 0.0
    %1296 = vmatprep.subr.mxu0 0.0
    %1297 = vmatpush1.msra.mxu0 0.0
    %1298 = vmatprep.subr.mxu0 0.0
    %1299 = vmatpush1.msra.mxu0 0.0
    %1300 = vmatprep.subr.mxu0 0.0
    %1301 = vmatpush1.msra.mxu0 0.0
    %1302 = vmatprep.subr.mxu0 0.0
    %1303 = vmatpush1.msra.mxu0 0.0
    %1304 = vmatprep.subr.mxu0 0.0
    %1305 = vmatpush1.msra.mxu0 0.0
    %1306 = vmatprep.subr.mxu0 0.0
    %1307 = vmatpush1.msra.mxu0 0.0
    %1308 = vmatprep.subr.mxu0 0.0
    %1309 = vmatpush1.msra.mxu0 0.0
    %1310 = vmatprep.subr.mxu0 0.0
    %1311 = vmatpush1.msra.mxu0 0.0
    %1312 = vmatprep.subr.mxu0 0.0
    %1313 = vmatpush1.msra.mxu0 0.0
    %1314 = vmatprep.subr.mxu0 0.0
    %1315 = vmatpush1.msra.mxu0 0.0
    %1316 = vmatprep.subr.mxu0 0.0
    %1317 = vmatpush1.msra.mxu0 0.0
    %1318 = vmatprep.subr.mxu0 0.0
    %1319 = vmatpush1.msra.mxu0 0.0
    %1320 = vmatprep.subr.mxu0 0.0
    %1321 = vmatpush1.msra.mxu0 0.0
    %1322 = vmatprep.subr.mxu0 0.0
    %1323 = vmatpush1.msra.mxu0 0.0
    %1324 = vmatprep.subr.mxu0 0.0
    %1325 = vmatpush1.msra.mxu0 0.0
    %1326 = vmatprep.subr.mxu0 0.0
    %1327 = vmatpush1.msra.mxu0 0.0
    %1328 = vmatprep.subr.mxu0 0.0
    %1329 = vmatpush1.msra.mxu0 0.0
    %1330 = vmatprep.subr.mxu0 0.0
    %1331 = vmatpush1.msra.mxu0 0.0
    %1332 = vmatprep.subr.mxu0 0.0
    %1333 = vmatpush1.msra.mxu0 0.0
    %1334 = vmatprep.subr.mxu0 0.0
    %1335 = vmatpush1.msra.mxu0 0.0
    %1336 = vmatprep.subr.mxu0 0.0
    %1337 = vmatpush1.msra.mxu0 0.0
    %1338 = vmatprep.subr.mxu0 0.0
    %1339 = vmatpush1.msra.mxu0 0.0
    %1340 = vmatprep.subr.mxu0 0.0
    %1341 = vmatpush1.msra.mxu0 0.0
    %1342 = vmatprep.subr.mxu0 0.0
    %1343 = vmatpush1.msra.mxu0 0.0
    %1344 = vmatprep.subr.mxu0 0.0
    %1345 = vmatpush1.msra.mxu0 0.0
    %1346 = vmatprep.subr.mxu0 0.0
    %1347 = vmatpush1.msra.mxu0 0.0
    %1348 = vmatprep.mubr.f32.mxu0 0.0
    %1349 = vmatmul.mubr.f32.gmra.mrb[0].mxu0 %v662
    %v1350 = vpop.f32.mrb[0].mxu0
    %v1351 = vadd.f32 0.0, %v1350
    %v1352 = vpop.f32.mrb[0].mxu0
    %1353 = vmatprep.mubr.f32.mxu0 0.0
    %1354 = vmatmul.mubr.f32.gmra.mrb[0].mxu0 %v665
    %v1355 = vpop.f32.mrb[0].mxu0
    %v1356 = vadd.f32 0.0, %v1355
    %v1357 = vpop.f32.mrb[0].mxu0
    %1358 = vmatprep.mubr.f32.mxu0 0.0
    %1359 = vmatmul.mubr.f32.gmra.mrb[0].mxu0 %v668
    %v1360 = vpop.f32.mrb[0].mxu0
    %v1361 = vadd.f32 0.0, %v1360
    %v1362 = vpop.f32.mrb[0].mxu0
    %1363 = vmatprep.mubr.f32.mxu0 0.0
    %1364 = vmatmul.mubr.f32.gmra.mrb[0].mxu0 %v671
    %v1365 = vpop.f32.mrb[0].mxu0
    %v1366 = vadd.f32 0.0, %v1365
    %v1367 = vpop.f32.mrb[0].mxu0
    %1368 = vmatprep.mubr.f32.mxu0 0.0
    %1369 = vmatmul.mubr.f32.gmra.mrb[0].mxu0 %v674
    %v1370 = vpop.f32.mrb[0].mxu0
    %v1371 = vadd.f32 0.0, %v1370
    %v1372 = vpop.f32.mrb[0].mxu0
    %1373 = vmatprep.mubr.f32.mxu0 0.0
    %1374 = vmatmul.mubr.f32.gmra.mrb[0].mxu0 %v677
    %v1375 = vpop.f32.mrb[0].mxu0
    %v1376 = vadd.f32 0.0, %v1375
    %v1377 = vpop.f32.mrb[0].mxu0
    %1378 = vmatprep.mubr.f32.mxu0 0.0
    %1379 = vmatmul.mubr.f32.gmra.mrb[0].mxu0 %v680
    %v1380 = vpop.f32.mrb[0].mxu0
    %v1381 = vadd.f32 0.0, %v1380
    %v1382 = vpop.f32.mrb[0].mxu0
    %1383 = vmatprep.mubr.f32.mxu0 0.0
    %1384 = vmatmul.mubr.f32.gmra.mrb[0].mxu0 %v683
    %v1385 = vpop.f32.mrb[0].mxu0
    %v1386 = vadd.f32 0.0, %v1385
    %v1387 = vpop.f32.mrb[0].mxu0
    %1388 = vmatprep.mubr.f32.mxu0 0.0
    %1389 = vmatmul.mubr.f32.gmra.mrb[0].mxu0 %v686
    %v1390 = vpop.f32.mrb[0].mxu0
    %v1391 = vadd.f32 0.0, %v1390
    %v1392 = vpop.f32.mrb[0].mxu0
    %1393 = vmatprep.mubr.f32.mxu0 0.0
    %1394 = vmatmul.mubr.f32.gmra.mrb[0].mxu0 %v689
    %v1395 = vpop.f32.mrb[0].mxu0
    %v1396 = vadd.f32 0.0, %v1395
    %v1397 = vpop.f32.mrb[0].mxu0
    %1398 = vmatprep.mubr.f32.mxu0 0.0
    %1399 = vmatmul.mubr.f32.gmra.mrb[0].mxu0 %v692
    %v1400 = vpop.f32.mrb[0].mxu0
    %v1401 = vadd.f32 0.0, %v1400
    %v1402 = vpop.f32.mrb[0].mxu0
    %1403 = vmatprep.mubr.f32.mxu0 0.0
    %1404 = vmatmul.mubr.f32.gmra.mrb[0].mxu0 %v695
    %v1405 = vpop.f32.mrb[0].mxu0
    %v1406 = vadd.f32 0.0, %v1405
    %v1407 = vpop.f32.mrb[0].mxu0
    %1408 = vmatprep.mubr.f32.mxu0 0.0
    %1409 = vmatmul.mubr.f32.gmra.mrb[0].mxu0 %v698
    %v1410 = vpop.f32.mrb[0].mxu0
    %v1411 = vadd.f32 0.0, %v1410
    %v1412 = vpop.f32.mrb[0].mxu0
    %1413 = vmatprep.mubr.f32.mxu0 0.0
    %1414 = vmatmul.mubr.f32.gmra.mrb[0].mxu0 %v701
    %v1415 = vpop.f32.mrb[0].mxu0
    %v1416 = vadd.f32 0.0, %v1415
    %v1417 = vpop.f32.mrb[0].mxu0
    %1418 = vmatprep.mubr.f32.mxu0 0.0
    %1419 = vmatmul.mubr.f32.gmra.mrb[0].mxu0 %v704
    %v1420 = vpop.f32.mrb[0].mxu0
    %v1421 = vadd.f32 0.0, %v1420
    %v1422 = vpop.f32.mrb[0].mxu0
    %1423 = vmatprep.mubr.f32.mxu0 0.0
    %1424 = vmatmul.mubr.f32.gmra.mrb[0].mxu0 %v707
    %v1425 = vpop.f32.mrb[0].mxu0
    %v1426 = vadd.f32 0.0, %v1425
    %v1427 = vpop.f32.mrb[0].mxu0
    %1428 = vdwg.mxu0
    %v1429 = vmul.f32 %v1351, %v70
    %v1430 = vmul.f32 %v1356, %v71
    %v1431 = vmul.f32 %v1361, %v72
    %v1432 = vmul.f32 %v1366, %v73
    %v1433 = vmul.f32 %v1371, %v74
    %v1434 = vmul.f32 %v1376, %v75
    %v1435 = vmul.f32 %v1381, %v76
    %v1436 = vmul.f32 %v1386, %v77
    %v1437 = vmul.f32 %v1391, %v78
    %v1438 = vmul.f32 %v1396, %v79
    %v1439 = vmul.f32 %v1401, %v80
    %v1440 = vmul.f32 %v1406, %v81
    %v1441 = vmul.f32 %v1411, %v82
    %v1442 = vmul.f32 %v1416, %v83
    %v1443 = vmul.f32 %v1421, %v84
    %v1444 = vmul.f32 %v1426, %v85
    %v1446 = vsel %vm126, %v273, 0
    %v1449 = vsel %vm126, %v278, 0
    %1451 = vmatprep.subr.mxu0 0.0
    %1452 = vmatpush1.msra.mxu0 %v1276
    %1453 = vmatprep.subr.mxu0 0.0
    %1454 = vmatpush1.msra.mxu0 %v1277
    %1455 = vmatprep.subr.mxu0 0.0
    %1456 = vmatpush1.msra.mxu0 %v1278
    %1457 = vmatprep.subr.mxu0 0.0
    %1458 = vmatpush1.msra.mxu0 %v1279
    %1459 = vmatprep.subr.mxu0 0.0
    %1460 = vmatpush1.msra.mxu0 %v1280
    %1461 = vmatprep.subr.mxu0 0.0
    %1462 = vmatpush1.msra.mxu0 %v1281
    %1463 = vmatprep.subr.mxu0 0.0
    %1464 = vmatpush1.msra.mxu0 %v1282
    %1465 = vmatprep.subr.mxu0 0.0
    %1466 = vmatpush1.msra.mxu0 %v1283
    %1467 = vmatprep.subr.mxu0 0.0
    %1468 = vmatpush1.msra.mxu0 0.0
    %1469 = vmatprep.subr.mxu0 0.0
    %1470 = vmatpush1.msra.mxu0 0.0
    %1471 = vmatprep.subr.mxu0 0.0
    %1472 = vmatpush1.msra.mxu0 0.0
    %1473 = vmatprep.subr.mxu0 0.0
    %1474 = vmatpush1.msra.mxu0 0.0
    %1475 = vmatprep.subr.mxu0 0.0
    %1476 = vmatpush1.msra.mxu0 0.0
    %1477 = vmatprep.subr.mxu0 0.0
    %1478 = vmatpush1.msra.mxu0 0.0
    %1479 = vmatprep.subr.mxu0 0.0
    %1480 = vmatpush1.msra.mxu0 0.0
    %1481 = vmatprep.subr.mxu0 0.0
    %1482 = vmatpush1.msra.mxu0 0.0
    %1483 = vmatprep.subr.mxu0 0.0
    %1484 = vmatpush1.msra.mxu0 0.0
    %1485 = vmatprep.subr.mxu0 0.0
    %1486 = vmatpush1.msra.mxu0 0.0
    %1487 = vmatprep.subr.mxu0 0.0
    %1488 = vmatpush1.msra.mxu0 0.0
    %1489 = vmatprep.subr.mxu0 0.0
    %1490 = vmatpush1.msra.mxu0 0.0
    %1491 = vmatprep.subr.mxu0 0.0
    %1492 = vmatpush1.msra.mxu0 0.0
    %1493 = vmatprep.subr.mxu0 0.0
    %1494 = vmatpush1.msra.mxu0 0.0
    %1495 = vmatprep.subr.mxu0 0.0
    %1496 = vmatpush1.msra.mxu0 0.0
    %1497 = vmatprep.subr.mxu0 0.0
    %1498 = vmatpush1.msra.mxu0 0.0
    %1499 = vmatprep.subr.mxu0 0.0
    %1500 = vmatpush1.msra.mxu0 0.0
    %1501 = vmatprep.subr.mxu0 0.0
    %1502 = vmatpush1.msra.mxu0 0.0
    %1503 = vmatprep.subr.mxu0 0.0
    %1504 = vmatpush1.msra.mxu0 0.0
    %1505 = vmatprep.subr.mxu0 0.0
    %1506 = vmatpush1.msra.mxu0 0.0
    %1507 = vmatprep.subr.mxu0 0.0
    %1508 = vmatpush1.msra.mxu0 0.0
    %1509 = vmatprep.subr.mxu0 0.0
    %1510 = vmatpush1.msra.mxu0 0.0
    %1511 = vmatprep.subr.mxu0 0.0
    %1512 = vmatpush1.msra.mxu0 0.0
    %1513 = vmatprep.subr.mxu0 0.0
    %1514 = vmatpush1.msra.mxu0 0.0
    %1515 = vmatprep.mubr.f32.mxu0 0.0
    %1516 = vmatmul.mubr.f32.gmra.mrb[0].mxu0 %v1446
    %v1517 = vpop.f32.mrb[0].mxu0
    %v1518 = vadd.f32 0.0, %v1517
    %v1519 = vpop.f32.mrb[0].mxu0
    %1520 = vmatprep.mubr.f32.mxu0 0.0
    %1521 = vmatmul.mubr.f32.gmra.mrb[0].mxu0 %v1449
    %v1522 = vpop.f32.mrb[0].mxu0
    %v1523 = vadd.f32 0.0, %v1522
    %v1524 = vpop.f32.mrb[0].mxu0
    %1525 = vdwg.mxu0
    %1526 = vmax.xlane.f32.xlu0 %v1518
    %v1527 = vpop.xlane.xlu0 %1526
    %1528 = vmax.xlane.f32.xlu0 %v1523
    %v1529 = vpop.xlane.xlu0 %1528
    %v1530 = vsub.f32 %v1518, %v1527
    %v1531 = vsub.f32 %v1523, %v1529
    %v1532 = vmul.f32 %v1530, 1.442695
    %v1533 = vpow.pop %v1532
    %v1534 = vmul.f32 %v1531, 1.442695
    %v1535 = vpow.pop %v1534
    %1536 = vmatprep.subr.mxu0 0.0
    %1537 = vmatpush1.msra.mxu0 %v94
    %1538 = vmatprep.subr.mxu0 0.0
    %1539 = vmatpush1.msra.mxu0 %v95
    %1540 = vmatprep.subr.mxu0 0.0
    %1541 = vmatpush1.msra.mxu0 %v96
    %1542 = vmatprep.subr.mxu0 0.0
    %1543 = vmatpush1.msra.mxu0 %v97
    %1544 = vmatprep.subr.mxu0 0.0
    %1545 = vmatpush1.msra.mxu0 %v98
    %1546 = vmatprep.subr.mxu0 0.0
    %1547 = vmatpush1.msra.mxu0 %v99
    %1548 = vmatprep.subr.mxu0 0.0
    %1549 = vmatpush1.msra.mxu0 %v100
    %1550 = vmatprep.subr.mxu0 0.0
    %1551 = vmatpush1.msra.mxu0 %v101
    %1552 = vmatprep.subr.mxu0 0.0
    %1553 = vmatpush1.msra.mxu0 %v102
    %1554 = vmatprep.subr.mxu0 0.0
    %1555 = vmatpush1.msra.mxu0 %v103
    %1556 = vmatprep.subr.mxu0 0.0
    %1557 = vmatpush1.msra.mxu0 %v104
    %1558 = vmatprep.subr.mxu0 0.0
    %1559 = vmatpush1.msra.mxu0 %v105
    %1560 = vmatprep.subr.mxu0 0.0
    %1561 = vmatpush1.msra.mxu0 %v106
    %1562 = vmatprep.subr.mxu0 0.0
    %1563 = vmatpush1.msra.mxu0 %v107
    %1564 = vmatprep.subr.mxu0 0.0
    %1565 = vmatpush1.msra.mxu0 %v108
    %1566 = vmatprep.subr.mxu0 0.0
    %1567 = vmatpush1.msra.mxu0 %v109
    %1568 = vmatprep.subr.mxu0 0.0
    %1569 = vmatpush1.msra.mxu0 0.0
    %1570 = vmatprep.subr.mxu0 0.0
    %1571 = vmatpush1.msra.mxu0 0.0
    %1572 = vmatprep.subr.mxu0 0.0
    %1573 = vmatpush1.msra.mxu0 0.0
    %1574 = vmatprep.subr.mxu0 0.0
    %1575 = vmatpush1.msra.mxu0 0.0
    %1576 = vmatprep.subr.mxu0 0.0
    %1577 = vmatpush1.msra.mxu0 0.0
    %1578 = vmatprep.subr.mxu0 0.0
    %1579 = vmatpush1.msra.mxu0 0.0
    %1580 = vmatprep.subr.mxu0 0.0
    %1581 = vmatpush1.msra.mxu0 0.0
    %1582 = vmatprep.subr.mxu0 0.0
    %1583 = vmatpush1.msra.mxu0 0.0
    %1584 = vmatprep.subr.mxu0 0.0
    %1585 = vmatpush1.msra.mxu0 0.0
    %1586 = vmatprep.subr.mxu0 0.0
    %1587 = vmatpush1.msra.mxu0 0.0
    %1588 = vmatprep.subr.mxu0 0.0
    %1589 = vmatpush1.msra.mxu0 0.0
    %1590 = vmatprep.subr.mxu0 0.0
    %1591 = vmatpush1.msra.mxu0 0.0
    %1592 = vmatprep.subr.mxu0 0.0
    %1593 = vmatpush1.msra.mxu0 0.0
    %1594 = vmatprep.subr.mxu0 0.0
    %1595 = vmatpush1.msra.mxu0 0.0
    %1596 = vmatprep.subr.mxu0 0.0
    %1597 = vmatpush1.msra.mxu0 0.0
    %1598 = vmatprep.subr.mxu0 0.0
    %1599 = vmatpush1.msra.mxu0 0.0
    %1600 = vmatprep.mubr.f32.mxu0 0.0
    %1601 = vmatmul.mubr.f32.gmra.mrb[0].mxu0 %v1533
    %v1602 = vpop.f32.mrb[0].mxu0
    %v1603 = vadd.f32 0.0, %v1602
    %v1604 = vpop.f32.mrb[0].mxu0
    %1605 = vmatprep.mubr.f32.mxu0 0.0
    %1606 = vmatmul.mubr.f32.gmra.mrb[0].mxu0 %v1535
    %v1607 = vpop.f32.mrb[0].mxu0
    %v1608 = vadd.f32 0.0, %v1607
    %v1609 = vpop.f32.mrb[0].mxu0
    %1610 = vdwg.mxu0
    %v1611 = vrcp.pop %v1603
    %v1612 = vmul.f32 %v1533, %v1611
    %v1613 = vrcp.pop %v1608
    %v1614 = vmul.f32 %v1535, %v1613
    %1615 = vmatprep.subr.mxu0 0.0
    %1616 = vmatpush1.msra.mxu0 %v1429
    %1617 = vmatprep.subr.mxu0 0.0
    %1618 = vmatpush1.msra.mxu0 %v1430
    %1619 = vmatprep.subr.mxu0 0.0
    %1620 = vmatpush1.msra.mxu0 %v1431
    %1621 = vmatprep.subr.mxu0 0.0
    %1622 = vmatpush1.msra.mxu0 %v1432
    %1623 = vmatprep.subr.mxu0 0.0
    %1624 = vmatpush1.msra.mxu0 %v1433
    %1625 = vmatprep.subr.mxu0 0.0
    %1626 = vmatpush1.msra.mxu0 %v1434
    %1627 = vmatprep.subr.mxu0 0.0
    %1628 = vmatpush1.msra.mxu0 %v1435
    %1629 = vmatprep.subr.mxu0 0.0
    %1630 = vmatpush1.msra.mxu0 %v1436
    %1631 = vmatprep.subr.mxu0 0.0
    %1632 = vmatpush1.msra.mxu0 %v1437
    %1633 = vmatprep.subr.mxu0 0.0
    %1634 = vmatpush1.msra.mxu0 %v1438
    %1635 = vmatprep.subr.mxu0 0.0
    %1636 = vmatpush1.msra.mxu0 %v1439
    %1637 = vmatprep.subr.mxu0 0.0
    %1638 = vmatpush1.msra.mxu0 %v1440
    %1639 = vmatprep.subr.mxu0 0.0
    %1640 = vmatpush1.msra.mxu0 %v1441
    %1641 = vmatprep.subr.mxu0 0.0
    %1642 = vmatpush1.msra.mxu0 %v1442
    %1643 = vmatprep.subr.mxu0 0.0
    %1644 = vmatpush1.msra.mxu0 %v1443
    %1645 = vmatprep.subr.mxu0 0.0
    %1646 = vmatpush1.msra.mxu0 %v1444
    %1647 = vmatprep.subr.mxu0 0.0
    %1648 = vmatpush1.msra.mxu0 0.0
    %1649 = vmatprep.subr.mxu0 0.0
    %1650 = vmatpush1.msra.mxu0 0.0
    %1651 = vmatprep.subr.mxu0 0.0
    %1652 = vmatpush1.msra.mxu0 0.0
    %1653 = vmatprep.subr.mxu0 0.0
    %1654 = vmatpush1.msra.mxu0 0.0
    %1655 = vmatprep.subr.mxu0 0.0
    %1656 = vmatpush1.msra.mxu0 0.0
    %1657 = vmatprep.subr.mxu0 0.0
    %1658 = vmatpush1.msra.mxu0 0.0
    %1659 = vmatprep.subr.mxu0 0.0
    %1660 = vmatpush1.msra.mxu0 0.0
    %1661 = vmatprep.subr.mxu0 0.0
    %1662 = vmatpush1.msra.mxu0 0.0
    %1663 = vmatprep.subr.mxu0 0.0
    %1664 = vmatpush1.msra.mxu0 0.0
    %1665 = vmatprep.subr.mxu0 0.0
    %1666 = vmatpush1.msra.mxu0 0.0
    %1667 = vmatprep.subr.mxu0 0.0
    %1668 = vmatpush1.msra.mxu0 0.0
    %1669 = vmatprep.subr.mxu0 0.0
    %1670 = vmatpush1.msra.mxu0 0.0
    %1671 = vmatprep.subr.mxu0 0.0
    %1672 = vmatpush1.msra.mxu0 0.0
    %1673 = vmatprep.subr.mxu0 0.0
    %1674 = vmatpush1.msra.mxu0 0.0
    %1675 = vmatprep.subr.mxu0 0.0
    %1676 = vmatpush1.msra.mxu0 0.0
    %1677 = vmatprep.subr.mxu0 0.0
    %1678 = vmatpush1.msra.mxu0 0.0
    %1679 = vmatprep.mubr.f32.mxu0 0.0
    %1680 = vmatmul.mubr.f32.gmra.mrb[0].mxu0 %v1612
    %v1681 = vpop.f32.mrb[0].mxu0
    %v1682 = vadd.f32 0.0, %v1681
    %v1683 = vpop.f32.mrb[0].mxu0
    %1684 = vmatprep.mubr.f32.mxu0 0.0
    %1685 = vmatmul.mubr.f32.gmra.mrb[0].mxu0 %v1614
    %v1686 = vpop.f32.mrb[0].mxu0
    %v1687 = vadd.f32 0.0, %v1686
    %v1688 = vpop.f32.mrb[0].mxu0
    %1689 = vdwg.mxu0
    %v1690 = vlaneseq
    %v1691 = vshrl.u32 %v1690, 7
    %v1692 = vsub.s32 0, %v1691
    %v1693 = vrot.slane %v123, %v1692
    %v1695 = vsel %vm126, %v1107, 0
    %v1698 = vsel %vm126, %v1112, 0
    %v1701 = vsel %vm126, %v1682, 0
    %v1704 = vsel %vm126, %v1687, 0
    %1706 = vmatprep.subr.mxu0 0.0
    %1707 = vmatpush1.msra.mxu0 %v46
    %1708 = vmatprep.subr.mxu0 0.0
    %1709 = vmatpush1.msra.mxu0 %v47
    %1710 = vmatprep.subr.mxu0 0.0
    %1711 = vmatpush1.msra.mxu0 %v48
    %1712 = vmatprep.subr.mxu0 0.0
    %1713 = vmatpush1.msra.mxu0 %v49
    %1714 = vmatprep.subr.mxu0 0.0
    %1715 = vmatpush1.msra.mxu0 %v50
    %1716 = vmatprep.subr.mxu0 0.0
    %1717 = vmatpush1.msra.mxu0 %v51
    %1718 = vmatprep.subr.mxu0 0.0
    %1719 = vmatpush1.msra.mxu0 %v52
    %1720 = vmatprep.subr.mxu0 0.0
    %1721 = vmatpush1.msra.mxu0 %v53
    %1722 = vmatprep.subr.mxu0 0.0
    %1723 = vmatpush1.msra.mxu0 0.0
    %1724 = vmatprep.subr.mxu0 0.0
    %1725 = vmatpush1.msra.mxu0 0.0
    %1726 = vmatprep.subr.mxu0 0.0
    %1727 = vmatpush1.msra.mxu0 0.0
    %1728 = vmatprep.subr.mxu0 0.0
    %1729 = vmatpush1.msra.mxu0 0.0
    %1730 = vmatprep.subr.mxu0 0.0
    %1731 = vmatpush1.msra.mxu0 0.0
    %1732 = vmatprep.subr.mxu0 0.0
    %1733 = vmatpush1.msra.mxu0 0.0
    %1734 = vmatprep.subr.mxu0 0.0
    %1735 = vmatpush1.msra.mxu0 0.0
    %1736 = vmatprep.subr.mxu0 0.0
    %1737 = vmatpush1.msra.mxu0 0.0
    %1738 = vmatprep.subr.mxu0 0.0
    %1739 = vmatpush1.msra.mxu0 0.0
    %1740 = vmatprep.subr.mxu0 0.0
    %1741 = vmatpush1.msra.mxu0 0.0
    %1742 = vmatprep.subr.mxu0 0.0
    %1743 = vmatpush1.msra.mxu0 0.0
    %1744 = vmatprep.subr.mxu0 0.0
    %1745 = vmatpush1.msra.mxu0 0.0
    %1746 = vmatprep.subr.mxu0 0.0
    %1747 = vmatpush1.msra.mxu0 0.0
    %1748 = vmatprep.subr.mxu0 0.0
    %1749 = vmatpush1.msra.mxu0 0.0
    %1750 = vmatprep.subr.mxu0 0.0
    %1751 = vmatpush1.msra.mxu0 0.0
    %1752 = vmatprep.subr.mxu0 0.0
    %1753 = vmatpush1.msra.mxu0 0.0
    %1754 = vmatprep.subr.mxu0 0.0
    %1755 = vmatpush1.msra.mxu0 0.0
    %1756 = vmatprep.subr.mxu0 0.0
    %1757 = vmatpush1.msra.mxu0 0.0
    %1758 = vmatprep.subr.mxu0 0.0
    %1759 = vmatpush1.msra.mxu0 0.0
    %1760 = vmatprep.subr.mxu0 0.0
    %1761 = vmatpush1.msra.mxu0 0.0
    %1762 = vmatprep.subr.mxu0 0.0
    %1763 = vmatpush1.msra.mxu0 0.0
    %1764 = vmatprep.subr.mxu0 0.0
    %1765 = vmatpush1.msra.mxu0 0.0
    %1766 = vmatprep.subr.mxu0 0.0
    %1767 = vmatpush1.msra.mxu0 0.0
    %1768 = vmatprep.subr.mxu0 0.0
    %1769 = vmatpush1.msra.mxu0 0.0
    %1770 = vmatprep.mubr.f32.mxu0 0.0
    %1771 = vmatmul.mubr.f32.gmra.mrb[0].mxu0 %v1695
    %v1772 = vpop.f32.mrb[0].mxu0
    %v1773 = vadd.f32 %v1693, %v1772
    %v1774 = vpop.f32.mrb[0].mxu0
    %1775 = vmatprep.mubr.f32.mxu0 0.0
    %1776 = vmatmul.mubr.f32.gmra.mrb[0].mxu0 %v1698
    %v1777 = vpop.f32.mrb[0].mxu0
    %v1778 = vadd.f32 %v1693, %v1777
    %v1779 = vpop.f32.mrb[0].mxu0
    %1780 = vmatprep.mubr.f32.mxu0 0.0
    %1781 = vmatmul.mubr.f32.gmra.mrb[0].mxu0 %v1701
    %v1782 = vpop.f32.mrb[0].mxu0
    %v1783 = vadd.f32 %v1693, %v1782
    %v1784 = vpop.f32.mrb[0].mxu0
    %1785 = vmatprep.mubr.f32.mxu0 0.0
    %1786 = vmatmul.mubr.f32.gmra.mrb[0].mxu0 %v1704
    %v1787 = vpop.f32.mrb[0].mxu0
    %v1788 = vadd.f32 %v1693, %v1787
    %v1789 = vpop.f32.mrb[0].mxu0
    %1790 = vdwg.mxu0
    %v1791 = vadd.f32 %v18, %v1773
    %v1792 = vadd.f32 %v19, %v1778
    %v1793 = vadd.f32 %v20, %v1783
    %v1794 = vadd.f32 %v21, %v1788
    %v1795 = vsel %vm126, %v1791, 0.0
    %1796 = vadd.xlane.f32.xlu0 %v1795
    %v1797 = vpop.xlane.xlu0 %1796
    %v1798 = vsel %vm126, %v1792, 0.0
    %1799 = vadd.xlane.f32.xlu0 %v1798
    %v1800 = vpop.xlane.xlu0 %1799
    %v1801 = vsel %vm126, %v1793, 0.0
    %1802 = vadd.xlane.f32.xlu0 %v1801
    %v1803 = vpop.xlane.xlu0 %1802
    %v1804 = vsel %vm126, %v1794, 0.0
    %1805 = vadd.xlane.f32.xlu0 %v1804
    %v1806 = vpop.xlane.xlu0 %1805
    %v1807 = vmul.f32 %v1797, %v139
    %v1808 = vmul.f32 %v1800, %v139
    %v1809 = vmul.f32 %v1803, %v139
    %v1810 = vmul.f32 %v1806, %v139
    %v1811 = vsub.f32 %v1791, %v1807
    %v1812 = vsub.f32 %v1792, %v1808
    %v1813 = vsub.f32 %v1793, %v1809
    %v1814 = vsub.f32 %v1794, %v1810
    %v1815 = vmul.f32 %v1811, %v1811
    %v1816 = vmul.f32 %v1812, %v1812
    %v1817 = vmul.f32 %v1813, %v1813
    %v1818 = vmul.f32 %v1814, %v1814
    %v1819 = vsel %vm126, %v1815, 0.0
    %1820 = vadd.xlane.f32.xlu0 %v1819
    %v1821 = vpop.xlane.xlu0 %1820
    %v1822 = vsel %vm126, %v1816, 0.0
    %1823 = vadd.xlane.f32.xlu0 %v1822
    %v1824 = vpop.xlane.xlu0 %1823
    %v1825 = vsel %vm126, %v1817, 0.0
    %1826 = vadd.xlane.f32.xlu0 %v1825
    %v1827 = vpop.xlane.xlu0 %1826
    %v1828 = vsel %vm126, %v1818, 0.0
    %1829 = vadd.xlane.f32.xlu0 %v1828
    %v1830 = vpop.xlane.xlu0 %1829
    %v1831 = vmul.f32 %v1821, %v139
    %v1832 = vmul.f32 %v1824, %v139
    %v1833 = vmul.f32 %v1827, %v139
    %v1834 = vmul.f32 %v1830, %v139
    %v1835 = vadd.f32 %v1831, 1e-05
    %v1836 = vadd.f32 %v1832, 1e-05
    %v1837 = vadd.f32 %v1833, 1e-05
    %v1838 = vadd.f32 %v1834, 1e-05
    %v1839 = vrsqrt.pop %v1835
    %v1840 = vrsqrt.pop %v1836
    %v1841 = vrsqrt.pop %v1837
    %v1842 = vrsqrt.pop %v1838
    %v1843 = vmul.f32 %v1811, %v1839
    %v1844 = vmul.f32 %v1812, %v1840
    %v1845 = vmul.f32 %v1813, %v1841
    %v1846 = vmul.f32 %v1814, %v1842
    %v1847 = vlaneseq
    %v1848 = vshrl.u32 %v1847, 7
    %v1849 = vsub.s32 0, %v1848
    %v1850 = vrot.slane %v125, %v1849
    %v1852 = vsel %vm126, %v1843, 0
    %v1855 = vsel %vm126, %v1844, 0
    %v1858 = vsel %vm126, %v1845, 0
    %v1861 = vsel %vm126, %v1846, 0
    %1863 = vmatprep.subr.mxu0 0.0
    %1864 = vmatpush1.msra.mxu0 %v86
    %1865 = vmatprep.subr.mxu0 0.0
    %1866 = vmatpush1.msra.mxu0 %v87
    %1867 = vmatprep.subr.mxu0 0.0
    %1868 = vmatpush1.msra.mxu0 %v88
    %1869 = vmatprep.subr.mxu0 0.0
    %1870 = vmatpush1.msra.mxu0 %v89
    %1871 = vmatprep.subr.mxu0 0.0
    %1872 = vmatpush1.msra.mxu0 %v90
    %1873 = vmatprep.subr.mxu0 0.0
    %1874 = vmatpush1.msra.mxu0 %v91
    %1875 = vmatprep.subr.mxu0 0.0
    %1876 = vmatpush1.msra.mxu0 %v92
    %1877 = vmatprep.subr.mxu0 0.0
    %1878 = vmatpush1.msra.mxu0 %v93
    %1879 = vmatprep.subr.mxu0 0.0
    %1880 = vmatpush1.msra.mxu0 0.0
    %1881 = vmatprep.subr.mxu0 0.0
    %1882 = vmatpush1.msra.mxu0 0.0
    %1883 = vmatprep.subr.mxu0 0.0
    %1884 = vmatpush1.msra.mxu0 0.0
    %1885 = vmatprep.subr.mxu0 0.0
    %1886 = vmatpush1.msra.mxu0 0.0
    %1887 = vmatprep.subr.mxu0 0.0
    %1888 = vmatpush1.msra.mxu0 0.0
    %1889 = vmatprep.subr.mxu0 0.0
    %1890 = vmatpush1.msra.mxu0 0.0
    %1891 = vmatprep.subr.mxu0 0.0
    %1892 = vmatpush1.msra.mxu0 0.0
    %1893 = vmatprep.subr.mxu0 0.0
    %1894 = vmatpush1.msra.mxu0 0.0
    %1895 = vmatprep.subr.mxu0 0.0
    %1896 = vmatpush1.msra.mxu0 0.0
    %1897 = vmatprep.subr.mxu0 0.0
    %1898 = vmatpush1.msra.mxu0 0.0
    %1899 = vmatprep.subr.mxu0 0.0
    %1900 = vmatpush1.msra.mxu0 0.0
    %1901 = vmatprep.subr.mxu0 0.0
    %1902 = vmatpush1.msra.mxu0 0.0
    %1903 = vmatprep.subr.mxu0 0.0
    %1904 = vmatpush1.msra.mxu0 0.0
    %1905 = vmatprep.subr.mxu0 0.0
    %1906 = vmatpush1.msra.mxu0 0.0
    %1907 = vmatprep.subr.mxu0 0.0
    %1908 = vmatpush1.msra.mxu0 0.0
    %1909 = vmatprep.subr.mxu0 0.0
    %1910 = vmatpush1.msra.mxu0 0.0
    %1911 = vmatprep.subr.mxu0 0.0
    %1912 = vmatpush1.msra.mxu0 0.0
    %1913 = vmatprep.subr.mxu0 0.0
    %1914 = vmatpush1.msra.mxu0 0.0
    %1915 = vmatprep.subr.mxu0 0.0
    %1916 = vmatpush1.msra.mxu0 0.0
    %1917 = vmatprep.subr.mxu0 0.0
    %1918 = vmatpush1.msra.mxu0 0.0
    %1919 = vmatprep.subr.mxu0 0.0
    %1920 = vmatpush1.msra.mxu0 0.0
    %1921 = vmatprep.subr.mxu0 0.0
    %1922 = vmatpush1.msra.mxu0 0.0
    %1923 = vmatprep.subr.mxu0 0.0
    %1924 = vmatpush1.msra.mxu0 0.0
    %1925 = vmatprep.subr.mxu0 0.0
    %1926 = vmatpush1.msra.mxu0 0.0
    %1927 = vmatprep.mubr.f32.mxu0 0.0
    %1928 = vmatmul.mubr.f32.gmra.mrb[0].mxu0 %v1852
    %v1929 = vpop.f32.mrb[0].mxu0
    %v1930 = vadd.f32 %v1850, %v1929
    %v1931 = vpop.f32.mrb[0].mxu0
    %1932 = vmatprep.mubr.f32.mxu0 0.0
    %1933 = vmatmul.mubr.f32.gmra.mrb[0].mxu0 %v1855
    %v1934 = vpop.f32.mrb[0].mxu0
    %v1935 = vadd.f32 %v1850, %v1934
    %v1936 = vpop.f32.mrb[0].mxu0
    %1937 = vmatprep.mubr.f32.mxu0 0.0
    %1938 = vmatmul.mubr.f32.gmra.mrb[0].mxu0 %v1858
    %v1939 = vpop.f32.mrb[0].mxu0
    %v1940 = vadd.f32 %v1850, %v1939
    %v1941 = vpop.f32.mrb[0].mxu0
    %1942 = vmatprep.mubr.f32.mxu0 0.0
    %1943 = vmatmul.mubr.f32.gmra.mrb[0].mxu0 %v1861
    %v1944 = vpop.f32.mrb[0].mxu0
    %v1945 = vadd.f32 %v1850, %v1944
    %v1946 = vpop.f32.mrb[0].mxu0
    %1947 = vdwg.mxu0
    %v1948 = vmax.f32 %v1930, 0.0
    %v1949 = vmax.f32 %v1935, 0.0
    %v1950 = vmax.f32 %v1940, 0.0
    %v1951 = vmax.f32 %v1945, 0.0
    %v1952 = vlaneseq
    %v1953 = vshrl.u32 %v1952, 7
    %v1954 = vsub.s32 0, %v1953
    %v1955 = vrot.slane %v124, %v1954
    %1956 = vmatprep.subr.mxu0 0.0
    %1957 = vmatpush1.msra.mxu0 %v54
    %1958 = vmatprep.subr.mxu0 0.0
    %1959 = vmatpush1.msra.mxu0 %v55
    %1960 = vmatprep.subr.mxu0 0.0
    %1961 = vmatpush1.msra.mxu0 %v56
    %1962 = vmatprep.subr.mxu0 0.0
    %1963 = vmatpush1.msra.mxu0 %v57
    %1964 = vmatprep.subr.mxu0 0.0
    %1965 = vmatpush1.msra.mxu0 %v58
    %1966 = vmatprep.subr.mxu0 0.0
    %1967 = vmatpush1.msra.mxu0 %v59
    %1968 = vmatprep.subr.mxu0 0.0
    %1969 = vmatpush1.msra.mxu0 %v60
    %1970 = vmatprep.subr.mxu0 0.0
    %1971 = vmatpush1.msra.mxu0 %v61
    %1972 = vmatprep.subr.mxu0 0.0
    %1973 = vmatpush1.msra.mxu0 %v62
    %1974 = vmatprep.subr.mxu0 0.0
    %1975 = vmatpush1.msra.mxu0 %v63
    %1976 = vmatprep.subr.mxu0 0.0
    %1977 = vmatpush1.msra.mxu0 %v64
    %1978 = vmatprep.subr.mxu0 0.0
    %1979 = vmatpush1.msra.mxu0 %v65
    %1980 = vmatprep.subr.mxu0 0.0
    %1981 = vmatpush1.msra.mxu0 %v66
    %1982 = vmatprep.subr.mxu0 0.0
    %1983 = vmatpush1.msra.mxu0 %v67
    %1984 = vmatprep.subr.mxu0 0.0
    %1985 = vmatpush1.msra.mxu0 %v68
    %1986 = vmatprep.subr.mxu0 0.0
    %1987 = vmatpush1.msra.mxu0 %v69
    %1988 = vmatprep.subr.mxu0 0.0
    %1989 = vmatpush1.msra.mxu0 0.0
    %1990 = vmatprep.subr.mxu0 0.0
    %1991 = vmatpush1.msra.mxu0 0.0
    %1992 = vmatprep.subr.mxu0 0.0
    %1993 = vmatpush1.msra.mxu0 0.0
    %1994 = vmatprep.subr.mxu0 0.0
    %1995 = vmatpush1.msra.mxu0 0.0
    %1996 = vmatprep.subr.mxu0 0.0
    %1997 = vmatpush1.msra.mxu0 0.0
    %1998 = vmatprep.subr.mxu0 0.0
    %1999 = vmatpush1.msra.mxu0 0.0
    %2000 = vmatprep.subr.mxu0 0.0
    %2001 = vmatpush1.msra.mxu0 0.0
    %2002 = vmatprep.subr.mxu0 0.0
    %2003 = vmatpush1.msra.mxu0 0.0
    %2004 = vmatprep.subr.mxu0 0.0
    %2005 = vmatpush1.msra.mxu0 0.0
    %2006 = vmatprep.subr.mxu0 0.0
    %2007 = vmatpush1.msra.mxu0 0.0
    %2008 = vmatprep.subr.mxu0 0.0
    %2009 = vmatpush1.msra.mxu0 0.0
    %2010 = vmatprep.subr.mxu0 0.0
    %2011 = vmatpush1.msra.mxu0 0.0
    %2012 = vmatprep.subr.mxu0 0.0
    %2013 = vmatpush1.msra.mxu0 0.0
    %2014 = vmatprep.subr.mxu0 0.0
    %2015 = vmatpush1.msra.mxu0 0.0
    %2016 = vmatprep.subr.mxu0 0.0
    %2017 = vmatpush1.msra.mxu0 0.0
    %2018 = vmatprep.subr.mxu0 0.0
    %2019 = vmatpush1.msra.mxu0 0.0
    %2020 = vmatprep.mubr.f32.mxu0 0.0
    %2021 = vmatmul.mubr.f32.gmra.mrb[0].mxu0 %v1948
    %v2022 = vpop.f32.mrb[0].mxu0
    %v2023 = vadd.f32 %v1955, %v2022
    %v2024 = vpop.f32.mrb[0].mxu0
    %2025 = vmatprep.mubr.f32.mxu0 0.0
    %2026 = vmatmul.mubr.f32.gmra.mrb[0].mxu0 %v1949
    %v2027 = vpop.f32.mrb[0].mxu0
    %v2028 = vadd.f32 %v1955, %v2027
    %v2029 = vpop.f32.mrb[0].mxu0
    %2030 = vmatprep.mubr.f32.mxu0 0.0
    %2031 = vmatmul.mubr.f32.gmra.mrb[0].mxu0 %v1950
    %v2032 = vpop.f32.mrb[0].mxu0
    %v2033 = vadd.f32 %v1955, %v2032
    %v2034 = vpop.f32.mrb[0].mxu0
    %2035 = vmatprep.mubr.f32.mxu0 0.0
    %2036 = vmatmul.mubr.f32.gmra.mrb[0].mxu0 %v1951
    %v2037 = vpop.f32.mrb[0].mxu0
    %v2038 = vadd.f32 %v1955, %v2037
    %v2039 = vpop.f32.mrb[0].mxu0
    %2040 = vdwg.mxu0
    %v2041 = vadd.f32 %v1791, %v2023
    %v2042 = vadd.f32 %v1792, %v2028
    %v2043 = vadd.f32 %v1793, %v2033
    %v2044 = vadd.f32 %v1794, %v2038
    %2047 = vrot.lane.b32.xlu0 %v2043, 64
    %v2048 = vpop.permute.xlu0 %2047
    %2049 = vrot.lane.b32.xlu0 %v2044, 64
    %v2050 = vpop.permute.xlu0 %2049
    %v2053 = vsel %vm126, %v2041, %v2048
    %v2054 = vsel %vm126, %v2042, %v2050
    %2055 = vst [vmem:[#allocation2] sm:$0xff] %v2053
    %2056 = vst [vmem:[#allocation2 + $0x8] sm:$0xff] %v2054
    // Predicated region
    $region18: #{tpu_custom_call.1} parent=1 // pred_check
      _
    $region19: #{tpu_custom_call.1} parent=1 // pred_check_branch
      %2058 = sbr.rel (0) target = $region21
    $region20: #{tpu_custom_call.1} parent=1 // pred_region
      %s2060 = ssub.s32 256, 256
      %2061 = vsyncadd [#allocation3], %s2060
      %s2062 = sshll.u32 [#allocation2], 4
      %s2063 = int_to_ptr.vmem [resolvable:$true] %s2062
      %2068 = dma.vmem_to_hbm [thread:$0]  %s2063, 256, %s4, [#allocation3], 128, 128, 8
    $region21: #{tpu_custom_call.1} parent=1 // pred_fallthru
      _
    // Predicated region
    $region22: #{tpu_custom_call.1} parent=1 // pred_check
      _
    $region23: #{tpu_custom_call.1} parent=1 // pred_check_branch
      %2070 = sbr.rel (0) target = $region25
    $region24: #{tpu_custom_call.1} parent=1 // pred_region
      %2071 = dma.done [#allocation3], 256
    $region25: #{tpu_custom_call.1} parent=1 // pred_fallthru
      _
    %2072 = vsyncpa [#allocation3], 1

</llo_original>
